<compile_context>
chip_gen: v5e
topology: v5e:2x2
jax: 0.10.0
libtpu: 0.0.40
codegen_flags: <defaults>
</compile_context>

<pallas_src>
import jax
import jax.numpy as jnp
from jax.experimental import pallas as pl
from jax.experimental.pallas import tpu as pltpu


# ---------------------------------------------------------------------------
# Kernel A: conv (GEMM) + bias + ReLU + fused 2x2 max-pool, lane-dense output
# ---------------------------------------------------------------------------

def _conv_relu_pool_kernel(w_ref, b_ref, a0_ref, a1_ref, a2_ref, a3_ref, o_ref):
    w = w_ref[...]                                             # (OC, K)
    r0 = jnp.dot(w, a0_ref[...], preferred_element_type=jnp.float32)
    r1 = jnp.dot(w, a1_ref[...], preferred_element_type=jnp.float32)
    r2 = jnp.dot(w, a2_ref[...], preferred_element_type=jnp.float32)
    r3 = jnp.dot(w, a3_ref[...], preferred_element_type=jnp.float32)
    acc = jnp.maximum(jnp.maximum(r0, r1), jnp.maximum(r2, r3))   # 2x2 max-pool
    o_ref[...] = jnp.maximum(acc + b_ref[...], 0.0).astype(o_ref.dtype)


def _pool_im2col(x_cnhw, kh, kw, Hp, Wp):
    """x: (C, B, H, W) -> 4 quadrant patch matrices, each (C*kh*kw, B*Hp*Wp).

    Quadrant (p, r) holds the im2col patches of the conv-output positions
    (2a+p, 2b+r) that feed pooled pixel (a, b).  Pure layout plumbing.
    """
    C, B, H, W = x_cnhw.shape
    quads = []
    for p in (0, 1):
        for r in (0, 1):
            cols = []
            for c in range(C):
                for di in range(kh):
                    for dj in range(kw):
                        sl = x_cnhw[c, :,
                                    p + di: p + di + 2 * Hp: 2,
                                    r + dj: r + dj + 2 * Wp: 2]   # (B, Hp, Wp)
                        cols.append(sl.reshape(B * Hp * Wp))
            quads.append(jnp.stack(cols, axis=0))                 # (K, Mp)
    return quads


def conv_relu_pool(x_cnhw, w, b):
    """Valid 3x3 conv + ReLU + 2x2/stride-2 max-pool (floor mode), fused.

    x_cnhw: (C, B, H, W) channels-major activation.
    Returns (OC, B, Hp, Wp) channels-major (no transpose needed downstream).
    """
    OC, C, kh, kw = w.shape
    Cx, B, H, W = x_cnhw.shape
    assert Cx == C
    Ho, Wo = H - kh + 1, W - kw + 1
    Hp, Wp = Ho // 2, Wo // 2
    K, Mp = C * kh * kw, B * Hp * Wp
    a0, a1, a2, a3 = _pool_im2col(x_cnhw, kh, kw, Hp, Wp)

    out = pl.pallas_call(
        _conv_relu_pool_kernel,
        out_shape=jax.ShapeDtypeStruct((OC, Mp), jnp.float32),
        grid=(1,),
        in_specs=[
            pl.BlockSpec((OC, K), lambda i: (0, 0)),
            pl.BlockSpec((OC, 1), lambda i: (0, 0)),
            pl.BlockSpec((K, Mp), lambda i: (0, 0)),
            pl.BlockSpec((K, Mp), lambda i: (0, 0)),
            pl.BlockSpec((K, Mp), lambda i: (0, 0)),
            pl.BlockSpec((K, Mp), lambda i: (0, 0)),
        ],
        out_specs=pl.BlockSpec((OC, Mp), lambda i: (0, 0)),
        compiler_params=pltpu.CompilerParams(dimension_semantics=("arbitrary",)),
    )(w.reshape(OC, K), b.reshape(OC, 1), a0, a1, a2, a3)
    return out.reshape(OC, B, Hp, Wp)


# ---------------------------------------------------------------------------
# Kernel B: fc1 + ReLU + fc2 + ReLU + fc3 + log_softmax, all in one call
# ---------------------------------------------------------------------------

def _fc_head_kernel(x_ref, w1_ref, b1_ref, w2_ref, b2_ref, w3_ref, b3_ref, o_ref):
    h = jnp.dot(x_ref[...], w1_ref[...], preferred_element_type=jnp.float32) + b1_ref[...]
    h = jnp.maximum(h, 0.0)
    h = jnp.dot(h, w2_ref[...], preferred_element_type=jnp.float32) + b2_ref[...]
    h = jnp.maximum(h, 0.0)
    z = jnp.dot(h, w3_ref[...], preferred_element_type=jnp.float32) + b3_ref[...]
    # numerically-stable log-softmax epilogue (f32 on VPU/EUP)
    m = jnp.max(z, axis=-1, keepdims=True)
    e = jnp.exp(z - m)
    s = jnp.sum(e, axis=-1, keepdims=True)
    o_ref[...] = (z - m - jnp.log(s)).astype(o_ref.dtype)


def fc_head(x, w1, b1, w2, b2, w3, b3):
    """(B, 400) -> (B, 10) log-probabilities. Weights are (in, out)."""
    B, D = x.shape
    N1, N2, N3 = w1.shape[1], w2.shape[1], w3.shape[1]
    TB = B if B <= 128 else 128            # batch tile (multiple of 8 when tiled)
    grid = (pl.cdiv(B, TB),)
    const = lambda i: (0, 0)
    tiled = lambda i: (i, 0)
    return pl.pallas_call(
        _fc_head_kernel,
        out_shape=jax.ShapeDtypeStruct((B, N3), jnp.float32),
        grid=grid,
        in_specs=[
            pl.BlockSpec((TB, D), tiled),
            pl.BlockSpec((D, N1), const), pl.BlockSpec((1, N1), const),
            pl.BlockSpec((N1, N2), const), pl.BlockSpec((1, N2), const),
            pl.BlockSpec((N2, N3), const), pl.BlockSpec((1, N3), const),
        ],
        out_specs=pl.BlockSpec((TB, N3), tiled),
        compiler_params=pltpu.CompilerParams(dimension_semantics=("parallel",)),
    )(x, w1, b1.reshape(1, N1), w2, b2.reshape(1, N2), w3, b3.reshape(1, N3))


# ---------------------------------------------------------------------------
# Model: parameters + forward
# ---------------------------------------------------------------------------

def init_params(key):
    ks = jax.random.split(key, 10)
    p = {}
    p["conv1_w"] = 0.1 * jax.random.normal(ks[0], (6, 1, 3, 3), jnp.float32)
    p["conv1_b"] = 0.1 * jax.random.normal(ks[1], (6,), jnp.float32)
    p["conv2_w"] = 0.1 * jax.random.normal(ks[2], (16, 6, 3, 3), jnp.float32)
    p["conv2_b"] = 0.1 * jax.random.normal(ks[3], (16,), jnp.float32)
    # FC weights stored pre-transposed as (in_features, out_features):
    # no .T materialization before the pallas_call.
    p["fc1_w"] = 0.05 * jax.random.normal(ks[4], (400, 120), jnp.float32)
    p["fc1_b"] = 0.05 * jax.random.normal(ks[5], (120,), jnp.float32)
    p["fc2_w"] = 0.05 * jax.random.normal(ks[6], (120, 84), jnp.float32)
    p["fc2_b"] = 0.05 * jax.random.normal(ks[7], (84,), jnp.float32)
    p["fc3_w"] = 0.05 * jax.random.normal(ks[8], (84, 10), jnp.float32)
    p["fc3_b"] = 0.05 * jax.random.normal(ks[9], (10,), jnp.float32)
    return p


def net_forward(params, x):
    # x: (B, 1, 28, 28) NCHW, as in the PyTorch module.
    B = x.shape[0]
    x = jnp.transpose(x, (1, 0, 2, 3))                             # (1, B, 28, 28); free for C=1
    x = conv_relu_pool(x, params["conv1_w"], params["conv1_b"])    # (6, B, 13, 13)
    x = conv_relu_pool(x, params["conv2_w"], params["conv2_b"])    # (16, B, 5, 5)
    # Flatten with PyTorch's NCHW (C, H, W) feature order -> (B, 400).
    x = jnp.transpose(x, (1, 0, 2, 3)).reshape(B, 16 * 5 * 5)
    return fc_head(x,
                   params["fc1_w"], params["fc1_b"],
                   params["fc2_w"], params["fc2_b"],
                   params["fc3_w"], params["fc3_b"])               # (B, 10)


# ---------------------------------------------------------------------------
# Pure-JAX reference for correctness checking
# ---------------------------------------------------------------------------

def _reference_forward(params, x):
    hp = jax.lax.Precision.HIGHEST

    def conv(x, w, b):
        y = jax.lax.conv_general_dilated(
            x, w, window_strides=(1, 1), padding="VALID",
            dimension_numbers=("NCHW", "OIHW", "NCHW"), precision=hp)
        return jax.nn.relu(y + b[None, :, None, None])

    def pool(x):
        B, C, H, W = x.shape
        Hp, Wp = H // 2, W // 2
        return x[:, :, :2 * Hp, :2 * Wp].reshape(B, C, Hp, 2, Wp, 2).max(axis=(3, 5))

    x = pool(conv(x, params["conv1_w"], params["conv1_b"]))
    x = pool(conv(x, params["conv2_w"], params["conv2_b"]))
    x = x.reshape(x.shape[0], -1)
    x = jax.nn.relu(jnp.dot(x, params["fc1_w"], precision=hp) + params["fc1_b"])
    x = jax.nn.relu(jnp.dot(x, params["fc2_w"], precision=hp) + params["fc2_b"])
    x = jnp.dot(x, params["fc3_w"], precision=hp) + params["fc3_b"]
    return jax.nn.log_softmax(x, axis=1)


if __name__ == "__main__":
    key = jax.random.PRNGKey(0)
    pkey, xkey = jax.random.split(key)
    params = init_params(pkey)
    x = jax.random.normal(xkey, (2, 1, 28, 28), jnp.float32)

    out = jax.block_until_ready(jax.jit(net_forward)(params, x))

    assert out.shape == (2, 10)
    # log-softmax rows must exponentiate-sum to ~1
    assert bool(jnp.all(jnp.abs(jnp.sum(jnp.exp(out), axis=1) - 1.0) < 1e-4))
    # match the pure-JAX reference forward pass
    ref = _reference_forward(params, x)
    assert bool(jnp.allclose(out, ref, atol=1e-3, rtol=1e-3)), "mismatch vs reference"

    print("KERNEL_OK")
</pallas_src>

<mosaic_0001>
module attributes {stable_mosaic.version = 11 : i64} {
  func.func @_conv_relu_pool_kernel(%arg0: i32, %arg1: memref<6x9xf32, #tpu.memory_space<vmem>>, %arg2: memref<6x1xf32, #tpu.memory_space<vmem>>, %arg3: memref<9x338xf32, #tpu.memory_space<vmem>>, %arg4: memref<9x338xf32, #tpu.memory_space<vmem>>, %arg5: memref<9x338xf32, #tpu.memory_space<vmem>>, %arg6: memref<9x338xf32, #tpu.memory_space<vmem>>, %arg7: memref<6x338xf32, #tpu.memory_space<vmem>>) attributes {dimension_semantics = [#tpu.dimension_semantics<arbitrary>], iteration_bounds = array<i64: 1>, scalar_prefetch = 0 : i64, scratch_operands = 0 : i64, tpu.core_type = #tpu.core_type<tc>, window_params = [{pipeline_mode = #tpu.pipeline_mode<synchronous>, transform_indices = @transform_0, window_bounds = array<i64: 6, 9>}, {pipeline_mode = #tpu.pipeline_mode<synchronous>, transform_indices = @transform_1, window_bounds = array<i64: 6, 1>}, {pipeline_mode = #tpu.pipeline_mode<synchronous>, transform_indices = @transform_2, window_bounds = array<i64: 9, 338>}, {pipeline_mode = #tpu.pipeline_mode<synchronous>, transform_indices = @transform_3, window_bounds = array<i64: 9, 338>}, {pipeline_mode = #tpu.pipeline_mode<synchronous>, transform_indices = @transform_4, window_bounds = array<i64: 9, 338>}, {pipeline_mode = #tpu.pipeline_mode<synchronous>, transform_indices = @transform_5, window_bounds = array<i64: 9, 338>}, {pipeline_mode = #tpu.pipeline_mode<synchronous>, transform_indices = @transform_6, window_bounds = array<i64: 6, 338>}]} {
    %c0 = arith.constant 0 : index
    %c0_0 = arith.constant 0 : index
    %0 = vector.load %arg1[%c0, %c0_0] : memref<6x9xf32, #tpu.memory_space<vmem>>, vector<6x9xf32>
    %c0_1 = arith.constant 0 : index
    %c0_2 = arith.constant 0 : index
    %1 = vector.load %arg3[%c0_1, %c0_2] : memref<9x338xf32, #tpu.memory_space<vmem>>, vector<9x338xf32>
    %cst = arith.constant dense<0.000000e+00> : vector<6x338xf32>
    %2 = tpu.matmul %0, %1, %cst {dimension_numbers = #tpu.dot_dimension_numbers<[1], [0], [0], [1], [0, 0, 1, 1], [], []>} : vector<6x9xf32>, vector<9x338xf32>, vector<6x338xf32> -> vector<6x338xf32>
    %c0_3 = arith.constant 0 : index
    %c0_4 = arith.constant 0 : index
    %3 = vector.load %arg4[%c0_3, %c0_4] : memref<9x338xf32, #tpu.memory_space<vmem>>, vector<9x338xf32>
    %cst_5 = arith.constant dense<0.000000e+00> : vector<6x338xf32>
    %4 = tpu.matmul %0, %3, %cst_5 {dimension_numbers = #tpu.dot_dimension_numbers<[1], [0], [0], [1], [0, 0, 1, 1], [], []>} : vector<6x9xf32>, vector<9x338xf32>, vector<6x338xf32> -> vector<6x338xf32>
    %c0_6 = arith.constant 0 : index
    %c0_7 = arith.constant 0 : index
    %5 = vector.load %arg5[%c0_6, %c0_7] : memref<9x338xf32, #tpu.memory_space<vmem>>, vector<9x338xf32>
    %cst_8 = arith.constant dense<0.000000e+00> : vector<6x338xf32>
    %6 = tpu.matmul %0, %5, %cst_8 {dimension_numbers = #tpu.dot_dimension_numbers<[1], [0], [0], [1], [0, 0, 1, 1], [], []>} : vector<6x9xf32>, vector<9x338xf32>, vector<6x338xf32> -> vector<6x338xf32>
    %c0_9 = arith.constant 0 : index
    %c0_10 = arith.constant 0 : index
    %7 = vector.load %arg6[%c0_9, %c0_10] : memref<9x338xf32, #tpu.memory_space<vmem>>, vector<9x338xf32>
    %cst_11 = arith.constant dense<0.000000e+00> : vector<6x338xf32>
    %8 = tpu.matmul %0, %7, %cst_11 {dimension_numbers = #tpu.dot_dimension_numbers<[1], [0], [0], [1], [0, 0, 1, 1], [], []>} : vector<6x9xf32>, vector<9x338xf32>, vector<6x338xf32> -> vector<6x338xf32>
    %9 = arith.maximumf %2, %4 : vector<6x338xf32>
    %10 = arith.maximumf %6, %8 : vector<6x338xf32>
    %11 = arith.maximumf %9, %10 : vector<6x338xf32>
    %c0_12 = arith.constant 0 : index
    %c0_13 = arith.constant 0 : index
    %12 = vector.load %arg2[%c0_12, %c0_13] : memref<6x1xf32, #tpu.memory_space<vmem>>, vector<6x1xf32>
    %13 = vector.broadcast %12 : vector<6x1xf32> to vector<6x338xf32>
    %14 = arith.addf %11, %13 : vector<6x338xf32>
    %cst_14 = arith.constant 0.000000e+00 : f32
    %15 = vector.broadcast %cst_14 : f32 to vector<6x338xf32>
    %16 = arith.maximumf %14, %15 : vector<6x338xf32>
    %c0_15 = arith.constant 0 : index
    %c0_16 = arith.constant 0 : index
    %17 = vector.load %arg7[%c0_15, %c0_16] : memref<6x338xf32, #tpu.memory_space<vmem>>, vector<6x338xf32>
    tpu.vector_store %arg7[%c0_15, %c0_16], %16 {strides = array<i32>} : memref<6x338xf32, #tpu.memory_space<vmem>>, vector<6x338xf32>,
    return
  }
  func.func @transform_0(%arg0: i32) -> (i32, i32) {
    %c0_i32 = arith.constant 0 : i32
    %c0_i32_0 = arith.constant 0 : i32
    %c0_i32_1 = arith.constant 0 : i32
    return %c0_i32, %c0_i32_0 : i32, i32
  }
  func.func @transform_1(%arg0: i32) -> (i32, i32) {
    %c0_i32 = arith.constant 0 : i32
    %c0_i32_0 = arith.constant 0 : i32
    %c0_i32_1 = arith.constant 0 : i32
    return %c0_i32, %c0_i32_0 : i32, i32
  }
  func.func @transform_2(%arg0: i32) -> (i32, i32) {
    %c0_i32 = arith.constant 0 : i32
    %c0_i32_0 = arith.constant 0 : i32
    %c0_i32_1 = arith.constant 0 : i32
    return %c0_i32, %c0_i32_0 : i32, i32
  }
  func.func @transform_3(%arg0: i32) -> (i32, i32) {
    %c0_i32 = arith.constant 0 : i32
    %c0_i32_0 = arith.constant 0 : i32
    %c0_i32_1 = arith.constant 0 : i32
    return %c0_i32, %c0_i32_0 : i32, i32
  }
  func.func @transform_4(%arg0: i32) -> (i32, i32) {
    %c0_i32 = arith.constant 0 : i32
    %c0_i32_0 = arith.constant 0 : i32
    %c0_i32_1 = arith.constant 0 : i32
    return %c0_i32, %c0_i32_0 : i32, i32
  }
  func.func @transform_5(%arg0: i32) -> (i32, i32) {
    %c0_i32 = arith.constant 0 : i32
    %c0_i32_0 = arith.constant 0 : i32
    %c0_i32_1 = arith.constant 0 : i32
    return %c0_i32, %c0_i32_0 : i32, i32
  }
  func.func @transform_6(%arg0: i32) -> (i32, i32) {
    %c0_i32 = arith.constant 0 : i32
    %c0_i32_0 = arith.constant 0 : i32
    %c0_i32_1 = arith.constant 0 : i32
    return %c0_i32, %c0_i32_0 : i32, i32
  }
}

module attributes {stable_mosaic.version = 11 : i64} {
  func.func @_conv_relu_pool_kernel(%arg0: i32, %arg1: memref<16x54xf32, #tpu.memory_space<vmem>>, %arg2: memref<16x1xf32, #tpu.memory_space<vmem>>, %arg3: memref<54x50xf32, #tpu.memory_space<vmem>>, %arg4: memref<54x50xf32, #tpu.memory_space<vmem>>, %arg5: memref<54x50xf32, #tpu.memory_space<vmem>>, %arg6: memref<54x50xf32, #tpu.memory_space<vmem>>, %arg7: memref<16x50xf32, #tpu.memory_space<vmem>>) attributes {dimension_semantics = [#tpu.dimension_semantics<arbitrary>], iteration_bounds = array<i64: 1>, scalar_prefetch = 0 : i64, scratch_operands = 0 : i64, tpu.core_type = #tpu.core_type<tc>, window_params = [{pipeline_mode = #tpu.pipeline_mode<synchronous>, transform_indices = @transform_0, window_bounds = array<i64: 16, 54>}, {pipeline_mode = #tpu.pipeline_mode<synchronous>, transform_indices = @transform_1, window_bounds = array<i64: 16, 1>}, {pipeline_mode = #tpu.pipeline_mode<synchronous>, transform_indices = @transform_2, window_bounds = array<i64: 54, 50>}, {pipeline_mode = #tpu.pipeline_mode<synchronous>, transform_indices = @transform_3, window_bounds = array<i64: 54, 50>}, {pipeline_mode = #tpu.pipeline_mode<synchronous>, transform_indices = @transform_4, window_bounds = array<i64: 54, 50>}, {pipeline_mode = #tpu.pipeline_mode<synchronous>, transform_indices = @transform_5, window_bounds = array<i64: 54, 50>}, {pipeline_mode = #tpu.pipeline_mode<synchronous>, transform_indices = @transform_6, window_bounds = array<i64: 16, 50>}]} {
    %c0 = arith.constant 0 : index
    %c0_0 = arith.constant 0 : index
    %0 = vector.load %arg1[%c0, %c0_0] : memref<16x54xf32, #tpu.memory_space<vmem>>, vector<16x54xf32>
    %c0_1 = arith.constant 0 : index
    %c0_2 = arith.constant 0 : index
    %1 = vector.load %arg3[%c0_1, %c0_2] : memref<54x50xf32, #tpu.memory_space<vmem>>, vector<54x50xf32>
    %cst = arith.constant dense<0.000000e+00> : vector<16x50xf32>
    %2 = tpu.matmul %0, %1, %cst {dimension_numbers = #tpu.dot_dimension_numbers<[1], [0], [0], [1], [0, 0, 1, 1], [], []>} : vector<16x54xf32>, vector<54x50xf32>, vector<16x50xf32> -> vector<16x50xf32>
    %c0_3 = arith.constant 0 : index
    %c0_4 = arith.constant 0 : index
    %3 = vector.load %arg4[%c0_3, %c0_4] : memref<54x50xf32, #tpu.memory_space<vmem>>, vector<54x50xf32>
    %cst_5 = arith.constant dense<0.000000e+00> : vector<16x50xf32>
    %4 = tpu.matmul %0, %3, %cst_5 {dimension_numbers = #tpu.dot_dimension_numbers<[1], [0], [0], [1], [0, 0, 1, 1], [], []>} : vector<16x54xf32>, vector<54x50xf32>, vector<16x50xf32> -> vector<16x50xf32>
    %c0_6 = arith.constant 0 : index
    %c0_7 = arith.constant 0 : index
    %5 = vector.load %arg5[%c0_6, %c0_7] : memref<54x50xf32, #tpu.memory_space<vmem>>, vector<54x50xf32>
    %cst_8 = arith.constant dense<0.000000e+00> : vector<16x50xf32>
    %6 = tpu.matmul %0, %5, %cst_8 {dimension_numbers = #tpu.dot_dimension_numbers<[1], [0], [0], [1], [0, 0, 1, 1], [], []>} : vector<16x54xf32>, vector<54x50xf32>, vector<16x50xf32> -> vector<16x50xf32>
    %c0_9 = arith.constant 0 : index
    %c0_10 = arith.constant 0 : index
    %7 = vector.load %arg6[%c0_9, %c0_10] : memref<54x50xf32, #tpu.memory_space<vmem>>, vector<54x50xf32>
    %cst_11 = arith.constant dense<0.000000e+00> : vector<16x50xf32>
    %8 = tpu.matmul %0, %7, %cst_11 {dimension_numbers = #tpu.dot_dimension_numbers<[1], [0], [0], [1], [0, 0, 1, 1], [], []>} : vector<16x54xf32>, vector<54x50xf32>, vector<16x50xf32> -> vector<16x50xf32>
    %9 = arith.maximumf %2, %4 : vector<16x50xf32>
    %10 = arith.maximumf %6, %8 : vector<16x50xf32>
    %11 = arith.maximumf %9, %10 : vector<16x50xf32>
    %c0_12 = arith.constant 0 : index
    %c0_13 = arith.constant 0 : index
    %12 = vector.load %arg2[%c0_12, %c0_13] : memref<16x1xf32, #tpu.memory_space<vmem>>, vector<16x1xf32>
    %13 = vector.broadcast %12 : vector<16x1xf32> to vector<16x50xf32>
    %14 = arith.addf %11, %13 : vector<16x50xf32>
    %cst_14 = arith.constant 0.000000e+00 : f32
    %15 = vector.broadcast %cst_14 : f32 to vector<16x50xf32>
    %16 = arith.maximumf %14, %15 : vector<16x50xf32>
    %c0_15 = arith.constant 0 : index
    %c0_16 = arith.constant 0 : index
    %17 = vector.load %arg7[%c0_15, %c0_16] : memref<16x50xf32, #tpu.memory_space<vmem>>, vector<16x50xf32>
    tpu.vector_store %arg7[%c0_15, %c0_16], %16 {strides = array<i32>} : memref<16x50xf32, #tpu.memory_space<vmem>>, vector<16x50xf32>,
    return
  }
  func.func @transform_0(%arg0: i32) -> (i32, i32) {
    %c0_i32 = arith.constant 0 : i32
    %c0_i32_0 = arith.constant 0 : i32
    %c0_i32_1 = arith.constant 0 : i32
    return %c0_i32, %c0_i32_0 : i32, i32
  }
  func.func @transform_1(%arg0: i32) -> (i32, i32) {
    %c0_i32 = arith.constant 0 : i32
    %c0_i32_0 = arith.constant 0 : i32
    %c0_i32_1 = arith.constant 0 : i32
    return %c0_i32, %c0_i32_0 : i32, i32
  }
  func.func @transform_2(%arg0: i32) -> (i32, i32) {
    %c0_i32 = arith.constant 0 : i32
    %c0_i32_0 = arith.constant 0 : i32
    %c0_i32_1 = arith.constant 0 : i32
    return %c0_i32, %c0_i32_0 : i32, i32
  }
  func.func @transform_3(%arg0: i32) -> (i32, i32) {
    %c0_i32 = arith.constant 0 : i32
    %c0_i32_0 = arith.constant 0 : i32
    %c0_i32_1 = arith.constant 0 : i32
    return %c0_i32, %c0_i32_0 : i32, i32
  }
  func.func @transform_4(%arg0: i32) -> (i32, i32) {
    %c0_i32 = arith.constant 0 : i32
    %c0_i32_0 = arith.constant 0 : i32
    %c0_i32_1 = arith.constant 0 : i32
    return %c0_i32, %c0_i32_0 : i32, i32
  }
  func.func @transform_5(%arg0: i32) -> (i32, i32) {
    %c0_i32 = arith.constant 0 : i32
    %c0_i32_0 = arith.constant 0 : i32
    %c0_i32_1 = arith.constant 0 : i32
    return %c0_i32, %c0_i32_0 : i32, i32
  }
  func.func @transform_6(%arg0: i32) -> (i32, i32) {
    %c0_i32 = arith.constant 0 : i32
    %c0_i32_0 = arith.constant 0 : i32
    %c0_i32_1 = arith.constant 0 : i32
    return %c0_i32, %c0_i32_0 : i32, i32
  }
}

module attributes {stable_mosaic.version = 11 : i64} {
  func.func @_fc_head_kernel(%arg0: i32, %arg1: memref<2x400xf32, #tpu.memory_space<vmem>>, %arg2: memref<400x120xf32, #tpu.memory_space<vmem>>, %arg3: memref<1x120xf32, #tpu.memory_space<vmem>>, %arg4: memref<120x84xf32, #tpu.memory_space<vmem>>, %arg5: memref<1x84xf32, #tpu.memory_space<vmem>>, %arg6: memref<84x10xf32, #tpu.memory_space<vmem>>, %arg7: memref<1x10xf32, #tpu.memory_space<vmem>>, %arg8: memref<2x10xf32, #tpu.memory_space<vmem>>) attributes {dimension_semantics = [#tpu.dimension_semantics<parallel>], iteration_bounds = array<i64: 1>, scalar_prefetch = 0 : i64, scratch_operands = 0 : i64, tpu.core_type = #tpu.core_type<tc>, window_params = [{transform_indices = @transform_0, window_bounds = array<i64: 2, 400>}, {pipeline_mode = #tpu.pipeline_mode<synchronous>, transform_indices = @transform_1, window_bounds = array<i64: 400, 120>}, {pipeline_mode = #tpu.pipeline_mode<synchronous>, transform_indices = @transform_2, window_bounds = array<i64: 1, 120>}, {pipeline_mode = #tpu.pipeline_mode<synchronous>, transform_indices = @transform_3, window_bounds = array<i64: 120, 84>}, {pipeline_mode = #tpu.pipeline_mode<synchronous>, transform_indices = @transform_4, window_bounds = array<i64: 1, 84>}, {pipeline_mode = #tpu.pipeline_mode<synchronous>, transform_indices = @transform_5, window_bounds = array<i64: 84, 10>}, {pipeline_mode = #tpu.pipeline_mode<synchronous>, transform_indices = @transform_6, window_bounds = array<i64: 1, 10>}, {transform_indices = @transform_7, window_bounds = array<i64: 2, 10>}]} {
    %c0 = arith.constant 0 : index
    %c0_0 = arith.constant 0 : index
    %0 = vector.load %arg1[%c0, %c0_0] : memref<2x400xf32, #tpu.memory_space<vmem>>, vector<2x400xf32>
    %c0_1 = arith.constant 0 : index
    %c0_2 = arith.constant 0 : index
    %1 = vector.load %arg2[%c0_1, %c0_2] : memref<400x120xf32, #tpu.memory_space<vmem>>, vector<400x120xf32>
    %cst = arith.constant dense<0.000000e+00> : vector<2x120xf32>
    %2 = tpu.matmul %0, %1, %cst {dimension_numbers = #tpu.dot_dimension_numbers<[1], [0], [0], [1], [0, 0, 1, 1], [], []>} : vector<2x400xf32>, vector<400x120xf32>, vector<2x120xf32> -> vector<2x120xf32>
    %c0_3 = arith.constant 0 : index
    %c0_4 = arith.constant 0 : index
    %3 = vector.load %arg3[%c0_3, %c0_4] : memref<1x120xf32, #tpu.memory_space<vmem>>, vector<1x120xf32>
    %4 = vector.broadcast %3 : vector<1x120xf32> to vector<2x120xf32>
    %5 = arith.addf %2, %4 : vector<2x120xf32>
    %cst_5 = arith.constant 0.000000e+00 : f32
    %6 = vector.broadcast %cst_5 : f32 to vector<2x120xf32>
    %7 = arith.maximumf %5, %6 : vector<2x120xf32>
    %c0_6 = arith.constant 0 : index
    %c0_7 = arith.constant 0 : index
    %8 = vector.load %arg4[%c0_6, %c0_7] : memref<120x84xf32, #tpu.memory_space<vmem>>, vector<120x84xf32>
    %cst_8 = arith.constant dense<0.000000e+00> : vector<2x84xf32>
    %9 = tpu.matmul %7, %8, %cst_8 {dimension_numbers = #tpu.dot_dimension_numbers<[1], [0], [0], [1], [0, 0, 1, 1], [], []>} : vector<2x120xf32>, vector<120x84xf32>, vector<2x84xf32> -> vector<2x84xf32>
    %c0_9 = arith.constant 0 : index
    %c0_10 = arith.constant 0 : index
    %10 = vector.load %arg5[%c0_9, %c0_10] : memref<1x84xf32, #tpu.memory_space<vmem>>, vector<1x84xf32>
    %11 = vector.broadcast %10 : vector<1x84xf32> to vector<2x84xf32>
    %12 = arith.addf %9, %11 : vector<2x84xf32>
    %cst_11 = arith.constant 0.000000e+00 : f32
    %13 = vector.broadcast %cst_11 : f32 to vector<2x84xf32>
    %14 = arith.maximumf %12, %13 : vector<2x84xf32>
    %c0_12 = arith.constant 0 : index
    %c0_13 = arith.constant 0 : index
    %15 = vector.load %arg6[%c0_12, %c0_13] : memref<84x10xf32, #tpu.memory_space<vmem>>, vector<84x10xf32>
    %cst_14 = arith.constant dense<0.000000e+00> : vector<2x10xf32>
    %16 = tpu.matmul %14, %15, %cst_14 {dimension_numbers = #tpu.dot_dimension_numbers<[1], [0], [0], [1], [0, 0, 1, 1], [], []>} : vector<2x84xf32>, vector<84x10xf32>, vector<2x10xf32> -> vector<2x10xf32>
    %c0_15 = arith.constant 0 : index
    %c0_16 = arith.constant 0 : index
    %17 = vector.load %arg7[%c0_15, %c0_16] : memref<1x10xf32, #tpu.memory_space<vmem>>, vector<1x10xf32>
    %18 = vector.broadcast %17 : vector<1x10xf32> to vector<2x10xf32>
    %19 = arith.addf %16, %18 : vector<2x10xf32>
    %cst_17 = arith.constant dense<0xFF800000> : vector<2xf32>
    %20 = vector.multi_reduction <maximumf>, %19, %cst_17 [1] : vector<2x10xf32> to vector<2xf32>
    %21 = vector.shape_cast %20 : vector<2xf32> to vector<2x1xf32>
    %22 = vector.broadcast %21 : vector<2x1xf32> to vector<2x10xf32>
    %23 = arith.subf %19, %22 : vector<2x10xf32>
    %24 = math.exp %23 : vector<2x10xf32>
    %cst_18 = arith.constant dense<0.000000e+00> : vector<2xf32>
    %25 = vector.multi_reduction <add>, %24, %cst_18 [1] : vector<2x10xf32> to vector<2xf32>
    %26 = vector.shape_cast %25 : vector<2xf32> to vector<2x1xf32>
    %27 = vector.broadcast %21 : vector<2x1xf32> to vector<2x10xf32>
    %28 = arith.subf %19, %27 : vector<2x10xf32>
    %29 = math.log %26 : vector<2x1xf32>
    %30 = vector.broadcast %29 : vector<2x1xf32> to vector<2x10xf32>
    %31 = arith.subf %28, %30 : vector<2x10xf32>
    %c0_19 = arith.constant 0 : index
    %c0_20 = arith.constant 0 : index
    %32 = vector.load %arg8[%c0_19, %c0_20] : memref<2x10xf32, #tpu.memory_space<vmem>>, vector<2x10xf32>
    tpu.vector_store %arg8[%c0_19, %c0_20], %31 {strides = array<i32>} : memref<2x10xf32, #tpu.memory_space<vmem>>, vector<2x10xf32>,
    return
  }
  func.func @transform_0(%arg0: i32) -> (i32, i32) {
    %c0_i32 = arith.constant 0 : i32
    %c0_i32_0 = arith.constant 0 : i32
    return %arg0, %c0_i32 : i32, i32
  }
  func.func @transform_1(%arg0: i32) -> (i32, i32) {
    %c0_i32 = arith.constant 0 : i32
    %c0_i32_0 = arith.constant 0 : i32
    %c0_i32_1 = arith.constant 0 : i32
    return %c0_i32, %c0_i32_0 : i32, i32
  }
  func.func @transform_2(%arg0: i32) -> (i32, i32) {
    %c0_i32 = arith.constant 0 : i32
    %c0_i32_0 = arith.constant 0 : i32
    %c0_i32_1 = arith.constant 0 : i32
    return %c0_i32, %c0_i32_0 : i32, i32
  }
  func.func @transform_3(%arg0: i32) -> (i32, i32) {
    %c0_i32 = arith.constant 0 : i32
    %c0_i32_0 = arith.constant 0 : i32
    %c0_i32_1 = arith.constant 0 : i32
    return %c0_i32, %c0_i32_0 : i32, i32
  }
  func.func @transform_4(%arg0: i32) -> (i32, i32) {
    %c0_i32 = arith.constant 0 : i32
    %c0_i32_0 = arith.constant 0 : i32
    %c0_i32_1 = arith.constant 0 : i32
    return %c0_i32, %c0_i32_0 : i32, i32
  }
  func.func @transform_5(%arg0: i32) -> (i32, i32) {
    %c0_i32 = arith.constant 0 : i32
    %c0_i32_0 = arith.constant 0 : i32
    %c0_i32_1 = arith.constant 0 : i32
    return %c0_i32, %c0_i32_0 : i32, i32
  }
  func.func @transform_6(%arg0: i32) -> (i32, i32) {
    %c0_i32 = arith.constant 0 : i32
    %c0_i32_0 = arith.constant 0 : i32
    %c0_i32_1 = arith.constant 0 : i32
    return %c0_i32, %c0_i32_0 : i32, i32
  }
  func.func @transform_7(%arg0: i32) -> (i32, i32) {
    %c0_i32 = arith.constant 0 : i32
    %c0_i32_0 = arith.constant 0 : i32
    return %arg0, %c0_i32 : i32, i32
  }
}

</mosaic_0001>

<llo_original>
// kernel: squeeze.256
$region0: #{squeeze.256}
  %s0 = inlined_call_operand.vmem [shape: f32[2,13,13], index: 0, kind: input, shape index: {}]
  %s1 = inlined_call_operand.vmem [shape: f32[1,338], index: 1, kind: output, shape index: {}]
  $region1: #{squeeze.256} parent=0
    #allocation0 [shape = 'u8[12288]{0}', space=vmem, size = 0x3000, scoped, tag = 'scoped mem for output reshape']
    %v2 = vld [vmem:[%s0] sm:$0x1]
    %vm3 = vcmask 105472
    %4 = vst.msk [vmem:[#allocation0] sm:$0x1] %vm3, %v2
    %s5 = scalar_lea.vmem %s0, 22
    %v6 = vld [vmem:[%s5] sm:$0x1]
    %s7 = scalar_lea.vmem %s0, 22
    %v8 = vld [vmem:[%s7] sm:$0x1]
    %vm9 = vcmask 72704
    %v10 = vsel %vm9, %v8, %v6
    %11 = vrot.lane.b32.xlu0 %v10, 119
    %v12 = vpop.permute.xlu0 %11
    %vm13 = vcmask 31744
    %s14 = scalar_lea.vmem [#allocation0], 16
    %15 = vst.msk [vmem:[%s14] sm:$0x1] %vm13, %v12
    %vm16 = vcmask 1048504
    %s17 = scalar_lea.vmem [#allocation0], 8
    %18 = vst.msk [vmem:[%s17] sm:$0x1] %vm16, %v12
    %s19 = scalar_lea.vmem %s0, 9
    %v20 = vld [vmem:[%s19] sm:$0x1]
    %s21 = scalar_lea.vmem %s0, 9
    %v22 = vld [vmem:[%s21] sm:$0x1]
    %vm23 = vcmask 89088
    %v24 = vsel %vm23, %v22, %v20
    %25 = vrot.lane.b32.xlu0 %v24, 117
    %v26 = vpop.permute.xlu0 %25
    %vm27 = vcmask 15360
    %s28 = scalar_lea.vmem [#allocation0], 8
    %29 = vst.msk [vmem:[%s28] sm:$0x1] %vm27, %v26
    %vm30 = vcmask 1048488
    %31 = vst.msk [vmem:[#allocation0] sm:$0x1] %vm30, %v26
    %s32 = scalar_lea.vmem %s0, 21
    %v33 = vld [vmem:[%s32] sm:$0x1]
    %34 = vrot.lane.b32.xlu0 %v33, 106
    %v35 = vpop.permute.xlu0 %34
    %vm36 = vcmask 974672
    %s37 = scalar_lea.vmem [#allocation0], 8
    %38 = vst.msk [vmem:[%s37] sm:$0x1] %vm36, %v35
    %s39 = scalar_lea.vmem %s0, 8
    %v40 = vld [vmem:[%s39] sm:$0x1]
    %41 = vrot.lane.b32.xlu0 %v40, 104
    %v42 = vpop.permute.xlu0 %41
    %vm43 = vcmask 958272
    %44 = vst.msk [vmem:[#allocation0] sm:$0x1] %vm43, %v42
    %s45 = scalar_lea.vmem %s0, 20
    %v46 = vld [vmem:[%s45] sm:$0x1]
    %47 = vrot.lane.b32.xlu0 %v46, 93
    %v48 = vpop.permute.xlu0 %47
    %vm49 = vcmask 868072
    %s50 = scalar_lea.vmem [#allocation0], 8
    %51 = vst.msk [vmem:[%s50] sm:$0x1] %vm49, %v48
    %s52 = scalar_lea.vmem %s0, 7
    %v53 = vld [vmem:[%s52] sm:$0x1]
    %54 = vrot.lane.b32.xlu0 %v53, 91
    %v55 = vpop.permute.xlu0 %54
    %vm56 = vcmask 851672
    %57 = vst.msk [vmem:[#allocation0] sm:$0x1] %vm56, %v55
    %s58 = scalar_lea.vmem %s0, 19
    %v59 = vld [vmem:[%s58] sm:$0x1]
    %60 = vrot.lane.b32.xlu0 %v59, 80
    %v61 = vpop.permute.xlu0 %60
    %vm62 = vcmask 761472
    %s63 = scalar_lea.vmem [#allocation0], 8
    %64 = vst.msk [vmem:[%s63] sm:$0x1] %vm62, %v61
    %s65 = scalar_lea.vmem %s0, 6
    %v66 = vld [vmem:[%s65] sm:$0x1]
    %67 = vrot.lane.b32.xlu0 %v66, 78
    %v68 = vpop.permute.xlu0 %67
    %vm69 = vcmask 745072
    %70 = vst.msk [vmem:[#allocation0] sm:$0x1] %vm69, %v68
    %s71 = scalar_lea.vmem %s0, 28
    %v72 = vld [vmem:[%s71] sm:$0x1]
    %73 = vrot.lane.b32.xlu0 %v72, 69
    %v74 = vpop.permute.xlu0 %73
    %vm75 = vcmask 671272
    %s76 = scalar_lea.vmem [#allocation0], 16
    %77 = vst.msk [vmem:[%s76] sm:$0x1] %vm75, %v74
    %s78 = scalar_lea.vmem %s0, 18
    %v79 = vld [vmem:[%s78] sm:$0x1]
    %80 = vrot.lane.b32.xlu0 %v79, 67
    %v81 = vpop.permute.xlu0 %80
    %vm82 = vcmask 654872
    %s83 = scalar_lea.vmem [#allocation0], 8
    %84 = vst.msk [vmem:[%s83] sm:$0x1] %vm82, %v81
    %s85 = scalar_lea.vmem %s0, 5
    %v86 = vld [vmem:[%s85] sm:$0x1]
    %87 = vrot.lane.b32.xlu0 %v86, 65
    %v88 = vpop.permute.xlu0 %87
    %vm89 = vcmask 638472
    %90 = vst.msk [vmem:[#allocation0] sm:$0x1] %vm89, %v88
    %s91 = scalar_lea.vmem %s0, 27
    %v92 = vld [vmem:[%s91] sm:$0x1]
    %93 = vrot.lane.b32.xlu0 %v92, 56
    %v94 = vpop.permute.xlu0 %93
    %vm95 = vcmask 564672
    %s96 = scalar_lea.vmem [#allocation0], 16
    %97 = vst.msk [vmem:[%s96] sm:$0x1] %vm95, %v94
    %s98 = scalar_lea.vmem %s0, 17
    %v99 = vld [vmem:[%s98] sm:$0x1]
    %100 = vrot.lane.b32.xlu0 %v99, 54
    %v101 = vpop.permute.xlu0 %100
    %vm102 = vcmask 548272
    %s103 = scalar_lea.vmem [#allocation0], 8
    %104 = vst.msk [vmem:[%s103] sm:$0x1] %vm102, %v101
    %s105 = scalar_lea.vmem %s0, 4
    %v106 = vld [vmem:[%s105] sm:$0x1]
    %107 = vrot.lane.b32.xlu0 %v106, 52
    %v108 = vpop.permute.xlu0 %107
    %vm109 = vcmask 531872
    %110 = vst.msk [vmem:[#allocation0] sm:$0x1] %vm109, %v108
    %s111 = scalar_lea.vmem %s0, 26
    %v112 = vld [vmem:[%s111] sm:$0x1]
    %113 = vrot.lane.b32.xlu0 %v112, 43
    %v114 = vpop.permute.xlu0 %113
    %vm115 = vcmask 458072
    %s116 = scalar_lea.vmem [#allocation0], 16
    %117 = vst.msk [vmem:[%s116] sm:$0x1] %vm115, %v114
    %s118 = scalar_lea.vmem %s0, 16
    %v119 = vld [vmem:[%s118] sm:$0x1]
    %120 = vrot.lane.b32.xlu0 %v119, 41
    %v121 = vpop.permute.xlu0 %120
    %vm122 = vcmask 441672
    %s123 = scalar_lea.vmem [#allocation0], 8
    %124 = vst.msk [vmem:[%s123] sm:$0x1] %vm122, %v121
    %s125 = scalar_lea.vmem %s0, 3
    %v126 = vld [vmem:[%s125] sm:$0x1]
    %127 = vrot.lane.b32.xlu0 %v126, 39
    %v128 = vpop.permute.xlu0 %127
    %vm129 = vcmask 425272
    %130 = vst.msk [vmem:[#allocation0] sm:$0x1] %vm129, %v128
    %s131 = scalar_lea.vmem %s0, 25
    %v132 = vld [vmem:[%s131] sm:$0x1]
    %133 = vrot.lane.b32.xlu0 %v132, 30
    %v134 = vpop.permute.xlu0 %133
    %vm135 = vcmask 351472
    %s136 = scalar_lea.vmem [#allocation0], 16
    %137 = vst.msk [vmem:[%s136] sm:$0x1] %vm135, %v134
    %s138 = scalar_lea.vmem %s0, 12
    %v139 = vld [vmem:[%s138] sm:$0x1]
    %140 = vrot.lane.b32.xlu0 %v139, 28
    %v141 = vpop.permute.xlu0 %140
    %vm142 = vcmask 335072
    %s143 = scalar_lea.vmem [#allocation0], 8
    %144 = vst.msk [vmem:[%s143] sm:$0x1] %vm142, %v141
    %s145 = scalar_lea.vmem %s0, 2
    %v146 = vld [vmem:[%s145] sm:$0x1]
    %147 = vrot.lane.b32.xlu0 %v146, 26
    %v148 = vpop.permute.xlu0 %147
    %vm149 = vcmask 318672
    %150 = vst.msk [vmem:[#allocation0] sm:$0x1] %vm149, %v148
    %s151 = scalar_lea.vmem %s0, 24
    %v152 = vld [vmem:[%s151] sm:$0x1]
    %153 = vrot.lane.b32.xlu0 %v152, 17
    %v154 = vpop.permute.xlu0 %153
    %vm155 = vcmask 244872
    %s156 = scalar_lea.vmem [#allocation0], 16
    %157 = vst.msk [vmem:[%s156] sm:$0x1] %vm155, %v154
    %s158 = scalar_lea.vmem %s0, 11
    %v159 = vld [vmem:[%s158] sm:$0x1]
    %160 = vrot.lane.b32.xlu0 %v159, 15
    %v161 = vpop.permute.xlu0 %160
    %vm162 = vcmask 228472
    %s163 = scalar_lea.vmem [#allocation0], 8
    %164 = vst.msk [vmem:[%s163] sm:$0x1] %vm162, %v161
    %s165 = scalar_lea.vmem %s0, 1
    %v166 = vld [vmem:[%s165] sm:$0x1]
    %167 = vrot.lane.b32.xlu0 %v166, 13
    %v168 = vpop.permute.xlu0 %167
    %vm169 = vcmask 212072
    %170 = vst.msk [vmem:[#allocation0] sm:$0x1] %vm169, %v168
    %s171 = scalar_lea.vmem %s0, 23
    %v172 = vld [vmem:[%s171] sm:$0x1]
    %173 = vrot.lane.b32.xlu0 %v172, 4
    %v174 = vpop.permute.xlu0 %173
    %vm175 = vcmask 138272
    %s176 = scalar_lea.vmem [#allocation0], 16
    %177 = vst.msk [vmem:[%s176] sm:$0x1] %vm175, %v174
    %s178 = scalar_lea.vmem %s0, 10
    %v179 = vld [vmem:[%s178] sm:$0x1]
    %180 = vrot.lane.b32.xlu0 %v179, 2
    %v181 = vpop.permute.xlu0 %180
    %vm182 = vcmask 121872
    %s183 = scalar_lea.vmem [#allocation0], 8
    %184 = vst.msk [vmem:[%s183] sm:$0x1] %vm182, %v181
    %s186 = ssub.s32 2, 1
    %v187 = vld [vmem:[#allocation0] sm:%s186]
    %s189 = ssub.s32 2, 1
    %190 = vst [vmem:[%s1] sm:%s189] %v187
    %s191 = scalar_lea.vmem [#allocation0], 8
    %v192 = vld [vmem:[%s191] sm:%s186]
    %s194 = ssub.s32 2, 1
    %s195 = scalar_lea.vmem %s1, 1
    %196 = vst [vmem:[%s195] sm:%s194] %v192
    %s197 = scalar_lea.vmem [#allocation0], 16
    %v198 = vld [vmem:[%s197] sm:%s186]
    %s200 = ssub.s32 2, 1
    %s201 = scalar_lea.vmem %s1, 2
    %202 = vst [vmem:[%s201] sm:%s200] %v198

// kernel: squeeze.292
$region0: #{squeeze.292}
  %s0 = inlined_call_operand.vmem [shape: f32[1,2,5,5], index: 0, kind: input, shape index: {}]
  %s1 = inlined_call_operand.vmem [shape: f32[1,50], index: 1, kind: output, shape index: {}]
  $region1: #{squeeze.292} parent=0
    #allocation0 [shape = 'u8[4096]{0}', space=vmem, size = 0x1000, scoped, tag = 'scoped mem for output reshape']
    %v2 = vld [vmem:[%s0] sm:$0x1]
    %vm3 = vcmask 39936
    %4 = vst.msk [vmem:[#allocation0] sm:$0x1] %vm3, %v2
    %s5 = scalar_lea.vmem %s0, 12
    %v6 = vld [vmem:[%s5] sm:$0x1]
    %7 = vrot.lane.b32.xlu0 %v6, 45
    %v8 = vpop.permute.xlu0 %7
    %vm9 = vcmask 408936
    %10 = vst.msk [vmem:[#allocation0] sm:$0x1] %vm9, %v8
    %s11 = scalar_lea.vmem %s0, 11
    %v12 = vld [vmem:[%s11] sm:$0x1]
    %13 = vrot.lane.b32.xlu0 %v12, 40
    %v14 = vpop.permute.xlu0 %13
    %vm15 = vcmask 367936
    %16 = vst.msk [vmem:[#allocation0] sm:$0x1] %vm15, %v14
    %s17 = scalar_lea.vmem %s0, 10
    %v18 = vld [vmem:[%s17] sm:$0x1]
    %19 = vrot.lane.b32.xlu0 %v18, 35
    %v20 = vpop.permute.xlu0 %19
    %vm21 = vcmask 326936
    %22 = vst.msk [vmem:[#allocation0] sm:$0x1] %vm21, %v20
    %s23 = scalar_lea.vmem %s0, 9
    %v24 = vld [vmem:[%s23] sm:$0x1]
    %25 = vrot.lane.b32.xlu0 %v24, 30
    %v26 = vpop.permute.xlu0 %25
    %vm27 = vcmask 285936
    %28 = vst.msk [vmem:[#allocation0] sm:$0x1] %vm27, %v26
    %s29 = scalar_lea.vmem %s0, 8
    %v30 = vld [vmem:[%s29] sm:$0x1]
    %31 = vrot.lane.b32.xlu0 %v30, 25
    %v32 = vpop.permute.xlu0 %31
    %vm33 = vcmask 244936
    %34 = vst.msk [vmem:[#allocation0] sm:$0x1] %vm33, %v32
    %s35 = scalar_lea.vmem %s0, 4
    %v36 = vld [vmem:[%s35] sm:$0x1]
    %37 = vrot.lane.b32.xlu0 %v36, 20
    %v38 = vpop.permute.xlu0 %37
    %vm39 = vcmask 203936
    %40 = vst.msk [vmem:[#allocation0] sm:$0x1] %vm39, %v38
    %s41 = scalar_lea.vmem %s0, 3
    %v42 = vld [vmem:[%s41] sm:$0x1]
    %43 = vrot.lane.b32.xlu0 %v42, 15
    %v44 = vpop.permute.xlu0 %43
    %vm45 = vcmask 162936
    %46 = vst.msk [vmem:[#allocation0] sm:$0x1] %vm45, %v44
    %s47 = scalar_lea.vmem %s0, 2
    %v48 = vld [vmem:[%s47] sm:$0x1]
    %49 = vrot.lane.b32.xlu0 %v48, 10
    %v50 = vpop.permute.xlu0 %49
    %vm51 = vcmask 121936
    %52 = vst.msk [vmem:[#allocation0] sm:$0x1] %vm51, %v50
    %s53 = scalar_lea.vmem %s0, 1
    %v54 = vld [vmem:[%s53] sm:$0x1]
    %55 = vrot.lane.b32.xlu0 %v54, 5
    %v56 = vpop.permute.xlu0 %55
    %vm57 = vcmask 80936
    %58 = vst.msk [vmem:[#allocation0] sm:$0x1] %vm57, %v56
    %s60 = ssub.s32 2, 1
    %v61 = vld [vmem:[#allocation0] sm:%s60]
    %s63 = ssub.s32 2, 1
    %64 = vst [vmem:[%s1] sm:%s63] %v61

// kernel: net_forward.3
$region0: #{net_forward.3}
  #allocation0 [shape = 'u32[]', space=smem, size = 0x4, offset = 0x4, fixed_abs, tag = 'smem constant byte address 0x4 - core index']
  #allocation1 [shape = 'u32[72,128]{1,0:T(1,128)}', space=vmem, size = 0x9000, scoped, tag = 'internal scratch']
  %s0 = inlined_call_operand.vmem [shape: f32[6,9], index: 0, kind: input, shape index: {}]
  %s1 = inlined_call_operand.vmem [shape: f32[6,1], index: 1, kind: input, shape index: {}]
  %s2 = inlined_call_operand.vmem [shape: f32[9,338], index: 2, kind: input, shape index: {}]
  %s3 = inlined_call_operand.vmem [shape: f32[9,338], index: 3, kind: input, shape index: {}]
  %s4 = inlined_call_operand.vmem [shape: f32[9,338], index: 4, kind: input, shape index: {}]
  %s5 = inlined_call_operand.vmem [shape: f32[9,338], index: 5, kind: input, shape index: {}]
  %s6 = inlined_call_operand.vmem [shape: f32[6,338], index: 6, kind: output, shape index: {}]
  %s7 = sld [smem:[#allocation0]]
  $region34: #{net_forward.3} parent=0
    _
  %s9 = ssub.s32 1, %s7
  %s10 = scalar_select 0, %s9, %s7
  // Predicated region
  $region2: #{net_forward.3} parent=0 // pred_check
    _
  $region3: #{net_forward.3} parent=0 // pred_check_branch
    %12 = sbr.rel (0) target = $region5
  $region4: #{net_forward.3} parent=0 // pred_region
    _
  $region5: #{net_forward.3} parent=0 // pred_fallthru
    _
  // Predicated region
  $region6: #{net_forward.3} parent=0 // pred_check
    _
  $region7: #{net_forward.3} parent=0 // pred_check_branch
    %14 = sbr.rel (0) target = $region9
  $region8: #{net_forward.3} parent=0 // pred_region
    _
  $region9: #{net_forward.3} parent=0 // pred_fallthru
    _
  // Predicated region
  $region10: #{net_forward.3} parent=0 // pred_check
    _
  $region11: #{net_forward.3} parent=0 // pred_check_branch
    %16 = sbr.rel (0) target = $region13
  $region12: #{net_forward.3} parent=0 // pred_region
    _
  $region13: #{net_forward.3} parent=0 // pred_fallthru
    _
  // Predicated region
  $region14: #{net_forward.3} parent=0 // pred_check
    _
  $region15: #{net_forward.3} parent=0 // pred_check_branch
    %18 = sbr.rel (0) target = $region17
  $region16: #{net_forward.3} parent=0 // pred_region
    _
  $region17: #{net_forward.3} parent=0 // pred_fallthru
    _
  // Predicated region
  $region18: #{net_forward.3} parent=0 // pred_check
    _
  $region19: #{net_forward.3} parent=0 // pred_check_branch
    %20 = sbr.rel (0) target = $region21
  $region20: #{net_forward.3} parent=0 // pred_region
    _
  $region21: #{net_forward.3} parent=0 // pred_fallthru
    _
  // Predicated region
  $region22: #{net_forward.3} parent=0 // pred_check
    _
  $region23: #{net_forward.3} parent=0 // pred_check_branch
    %22 = sbr.rel (0) target = $region25
  $region24: #{net_forward.3} parent=0 // pred_region
    _
  $region25: #{net_forward.3} parent=0 // pred_fallthru
    _
  %v23 = vld [vmem:[%s0] sm:$0x3f]
  %v24 = vld [vmem:[%s2] sm:$0xff]
  %v25 = vld [vmem:[%s2 + $0x8] sm:$0xff]
  %v26 = vld [vmem:[%s2 + $0x10] sm:$0xff]
  %v27 = vld [vmem:[%s2 + $0x18] sm:$0x1]
  %v28 = vld [vmem:[%s2 + $0x20] sm:$0x1]
  %v29 = vld [vmem:[%s2 + $0x28] sm:$0x1]
  %vm30 = vcmask 72704
  %v32 = vsel %vm30, %v23, 0
  %vm34 = vcmask 1040384
  %v36 = vsel %vm34, %v27, 0
  %v39 = vsel %vm34, %v28, 0
  %v42 = vsel %vm34, %v29, 0
  %44 = vmatpush.msra.mxu0 0.0
  %45 = vmatpush.msra.mxu0 0.0
  %46 = vmatpush.msra.mxu0 0.0
  %47 = vmatpush.msra.mxu0 0.0
  %48 = vmatpush.msra.mxu0 0.0
  %49 = vmatpush.msra.mxu0 0.0
  %50 = vmatpush.msra.mxu0 0.0
  %51 = vmatpush.msra.mxu0 0.0
  %52 = vmatpush.msra.mxu0 0.0
  %53 = vmatpush.msra.mxu0 0.0
  %54 = vmatpush.msra.mxu0 0.0
  %55 = vmatpush.msra.mxu0 0.0
  %56 = vmatpush.msra.mxu0 0.0
  %57 = vmatpush.msra.mxu0 0.0
  %58 = vmatpush.msra.mxu0 %v36
  %59 = vmatpush.msra.mxu0 %v24
  %60 = vmatmul.f32.gmra.mxu0 %v32
  %v61 = vpop.f32.mrf.mxu0
  %v62 = vadd.f32 0.0, %v61
  %63 = vdwg.mxu0
  %64 = vmatpush.msra.mxu0 0.0
  %65 = vmatpush.msra.mxu0 0.0
  %66 = vmatpush.msra.mxu0 0.0
  %67 = vmatpush.msra.mxu0 0.0
  %68 = vmatpush.msra.mxu0 0.0
  %69 = vmatpush.msra.mxu0 0.0
  %70 = vmatpush.msra.mxu0 0.0
  %71 = vmatpush.msra.mxu0 0.0
  %72 = vmatpush.msra.mxu0 0.0
  %73 = vmatpush.msra.mxu0 0.0
  %74 = vmatpush.msra.mxu0 0.0
  %75 = vmatpush.msra.mxu0 0.0
  %76 = vmatpush.msra.mxu0 0.0
  %77 = vmatpush.msra.mxu0 0.0
  %78 = vmatpush.msra.mxu0 %v39
  %79 = vmatpush.msra.mxu0 %v25
  %80 = vmatmul.f32.gmra.mxu0 %v32
  %v81 = vpop.f32.mrf.mxu0
  %v82 = vadd.f32 0.0, %v81
  %83 = vdwg.mxu0
  %84 = vmatpush.msra.mxu0 0.0
  %85 = vmatpush.msra.mxu0 0.0
  %86 = vmatpush.msra.mxu0 0.0
  %87 = vmatpush.msra.mxu0 0.0
  %88 = vmatpush.msra.mxu0 0.0
  %89 = vmatpush.msra.mxu0 0.0
  %90 = vmatpush.msra.mxu0 0.0
  %91 = vmatpush.msra.mxu0 0.0
  %92 = vmatpush.msra.mxu0 0.0
  %93 = vmatpush.msra.mxu0 0.0
  %94 = vmatpush.msra.mxu0 0.0
  %95 = vmatpush.msra.mxu0 0.0
  %96 = vmatpush.msra.mxu0 0.0
  %97 = vmatpush.msra.mxu0 0.0
  %98 = vmatpush.msra.mxu0 %v42
  %99 = vmatpush.msra.mxu0 %v26
  %100 = vmatmul.f32.gmra.mxu0 %v32
  %v101 = vpop.f32.mrf.mxu0
  %v102 = vadd.f32 0.0, %v101
  %103 = vdwg.mxu0
  %v104 = vld [vmem:[%s3] sm:$0xff]
  %v105 = vld [vmem:[%s3 + $0x8] sm:$0xff]
  %v106 = vld [vmem:[%s3 + $0x10] sm:$0xff]
  %v107 = vld [vmem:[%s3 + $0x18] sm:$0x1]
  %v108 = vld [vmem:[%s3 + $0x20] sm:$0x1]
  %v109 = vld [vmem:[%s3 + $0x28] sm:$0x1]
  %v111 = vsel %vm34, %v107, 0
  %v114 = vsel %vm34, %v108, 0
  %v117 = vsel %vm34, %v109, 0
  %119 = vmatpush.msra.mxu0 0.0
  %120 = vmatpush.msra.mxu0 0.0
  %121 = vmatpush.msra.mxu0 0.0
  %122 = vmatpush.msra.mxu0 0.0
  %123 = vmatpush.msra.mxu0 0.0
  %124 = vmatpush.msra.mxu0 0.0
  %125 = vmatpush.msra.mxu0 0.0
  %126 = vmatpush.msra.mxu0 0.0
  %127 = vmatpush.msra.mxu0 0.0
  %128 = vmatpush.msra.mxu0 0.0
  %129 = vmatpush.msra.mxu0 0.0
  %130 = vmatpush.msra.mxu0 0.0
  %131 = vmatpush.msra.mxu0 0.0
  %132 = vmatpush.msra.mxu0 0.0
  %133 = vmatpush.msra.mxu0 %v111
  %134 = vmatpush.msra.mxu0 %v104
  %135 = vmatmul.f32.gmra.mxu0 %v32
  %v136 = vpop.f32.mrf.mxu0
  %v137 = vadd.f32 0.0, %v136
  %138 = vdwg.mxu0
  %139 = vmatpush.msra.mxu0 0.0
  %140 = vmatpush.msra.mxu0 0.0
  %141 = vmatpush.msra.mxu0 0.0
  %142 = vmatpush.msra.mxu0 0.0
  %143 = vmatpush.msra.mxu0 0.0
  %144 = vmatpush.msra.mxu0 0.0
  %145 = vmatpush.msra.mxu0 0.0
  %146 = vmatpush.msra.mxu0 0.0
  %147 = vmatpush.msra.mxu0 0.0
  %148 = vmatpush.msra.mxu0 0.0
  %149 = vmatpush.msra.mxu0 0.0
  %150 = vmatpush.msra.mxu0 0.0
  %151 = vmatpush.msra.mxu0 0.0
  %152 = vmatpush.msra.mxu0 0.0
  %153 = vmatpush.msra.mxu0 %v114
  %154 = vmatpush.msra.mxu0 %v105
  %155 = vmatmul.f32.gmra.mxu0 %v32
  %v156 = vpop.f32.mrf.mxu0
  %v157 = vadd.f32 0.0, %v156
  %158 = vdwg.mxu0
  %159 = vmatpush.msra.mxu0 0.0
  %160 = vmatpush.msra.mxu0 0.0
  %161 = vmatpush.msra.mxu0 0.0
  %162 = vmatpush.msra.mxu0 0.0
  %163 = vmatpush.msra.mxu0 0.0
  %164 = vmatpush.msra.mxu0 0.0
  %165 = vmatpush.msra.mxu0 0.0
  %166 = vmatpush.msra.mxu0 0.0
  %167 = vmatpush.msra.mxu0 0.0
  %168 = vmatpush.msra.mxu0 0.0
  %169 = vmatpush.msra.mxu0 0.0
  %170 = vmatpush.msra.mxu0 0.0
  %171 = vmatpush.msra.mxu0 0.0
  %172 = vmatpush.msra.mxu0 0.0
  %173 = vmatpush.msra.mxu0 %v117
  %174 = vmatpush.msra.mxu0 %v106
  %175 = vmatmul.f32.gmra.mxu0 %v32
  %v176 = vpop.f32.mrf.mxu0
  %v177 = vadd.f32 0.0, %v176
  %178 = vdwg.mxu0
  %v179 = vld [vmem:[%s4] sm:$0xff]
  %v180 = vld [vmem:[%s4 + $0x8] sm:$0xff]
  %v181 = vld [vmem:[%s4 + $0x10] sm:$0xff]
  %v182 = vld [vmem:[%s4 + $0x18] sm:$0x1]
  %v183 = vld [vmem:[%s4 + $0x20] sm:$0x1]
  %v184 = vld [vmem:[%s4 + $0x28] sm:$0x1]
  %v186 = vsel %vm34, %v182, 0
  %v189 = vsel %vm34, %v183, 0
  %v192 = vsel %vm34, %v184, 0
  %194 = vmatpush.msra.mxu0 0.0
  %195 = vmatpush.msra.mxu0 0.0
  %196 = vmatpush.msra.mxu0 0.0
  %197 = vmatpush.msra.mxu0 0.0
  %198 = vmatpush.msra.mxu0 0.0
  %199 = vmatpush.msra.mxu0 0.0
  %200 = vmatpush.msra.mxu0 0.0
  %201 = vmatpush.msra.mxu0 0.0
  %202 = vmatpush.msra.mxu0 0.0
  %203 = vmatpush.msra.mxu0 0.0
  %204 = vmatpush.msra.mxu0 0.0
  %205 = vmatpush.msra.mxu0 0.0
  %206 = vmatpush.msra.mxu0 0.0
  %207 = vmatpush.msra.mxu0 0.0
  %208 = vmatpush.msra.mxu0 %v186
  %209 = vmatpush.msra.mxu0 %v179
  %210 = vmatmul.f32.gmra.mxu0 %v32
  %v211 = vpop.f32.mrf.mxu0
  %v212 = vadd.f32 0.0, %v211
  %213 = vdwg.mxu0
  %214 = vmatpush.msra.mxu0 0.0
  %215 = vmatpush.msra.mxu0 0.0
  %216 = vmatpush.msra.mxu0 0.0
  %217 = vmatpush.msra.mxu0 0.0
  %218 = vmatpush.msra.mxu0 0.0
  %219 = vmatpush.msra.mxu0 0.0
  %220 = vmatpush.msra.mxu0 0.0
  %221 = vmatpush.msra.mxu0 0.0
  %222 = vmatpush.msra.mxu0 0.0
  %223 = vmatpush.msra.mxu0 0.0
  %224 = vmatpush.msra.mxu0 0.0
  %225 = vmatpush.msra.mxu0 0.0
  %226 = vmatpush.msra.mxu0 0.0
  %227 = vmatpush.msra.mxu0 0.0
  %228 = vmatpush.msra.mxu0 %v189
  %229 = vmatpush.msra.mxu0 %v180
  %230 = vmatmul.f32.gmra.mxu0 %v32
  %v231 = vpop.f32.mrf.mxu0
  %v232 = vadd.f32 0.0, %v231
  %233 = vdwg.mxu0
  %234 = vmatpush.msra.mxu0 0.0
  %235 = vmatpush.msra.mxu0 0.0
  %236 = vmatpush.msra.mxu0 0.0
  %237 = vmatpush.msra.mxu0 0.0
  %238 = vmatpush.msra.mxu0 0.0
  %239 = vmatpush.msra.mxu0 0.0
  %240 = vmatpush.msra.mxu0 0.0
  %241 = vmatpush.msra.mxu0 0.0
  %242 = vmatpush.msra.mxu0 0.0
  %243 = vmatpush.msra.mxu0 0.0
  %244 = vmatpush.msra.mxu0 0.0
  %245 = vmatpush.msra.mxu0 0.0
  %246 = vmatpush.msra.mxu0 0.0
  %247 = vmatpush.msra.mxu0 0.0
  %248 = vmatpush.msra.mxu0 %v192
  %249 = vmatpush.msra.mxu0 %v181
  %250 = vmatmul.f32.gmra.mxu0 %v32
  %v251 = vpop.f32.mrf.mxu0
  %v252 = vadd.f32 0.0, %v251
  %253 = vdwg.mxu0
  %v254 = vld [vmem:[%s5] sm:$0xff]
  %v255 = vld [vmem:[%s5 + $0x8] sm:$0xff]
  %v256 = vld [vmem:[%s5 + $0x10] sm:$0xff]
  %v257 = vld [vmem:[%s5 + $0x18] sm:$0x1]
  %v258 = vld [vmem:[%s5 + $0x20] sm:$0x1]
  %v259 = vld [vmem:[%s5 + $0x28] sm:$0x1]
  %v261 = vsel %vm34, %v257, 0
  %v264 = vsel %vm34, %v258, 0
  %v267 = vsel %vm34, %v259, 0
  %269 = vmatpush.msra.mxu0 0.0
  %270 = vmatpush.msra.mxu0 0.0
  %271 = vmatpush.msra.mxu0 0.0
  %272 = vmatpush.msra.mxu0 0.0
  %273 = vmatpush.msra.mxu0 0.0
  %274 = vmatpush.msra.mxu0 0.0
  %275 = vmatpush.msra.mxu0 0.0
  %276 = vmatpush.msra.mxu0 0.0
  %277 = vmatpush.msra.mxu0 0.0
  %278 = vmatpush.msra.mxu0 0.0
  %279 = vmatpush.msra.mxu0 0.0
  %280 = vmatpush.msra.mxu0 0.0
  %281 = vmatpush.msra.mxu0 0.0
  %282 = vmatpush.msra.mxu0 0.0
  %283 = vmatpush.msra.mxu0 %v261
  %284 = vmatpush.msra.mxu0 %v254
  %285 = vmatmul.f32.gmra.mxu0 %v32
  %v286 = vpop.f32.mrf.mxu0
  %v287 = vadd.f32 0.0, %v286
  %288 = vdwg.mxu0
  %289 = vmatpush.msra.mxu0 0.0
  %290 = vmatpush.msra.mxu0 0.0
  %291 = vmatpush.msra.mxu0 0.0
  %292 = vmatpush.msra.mxu0 0.0
  %293 = vmatpush.msra.mxu0 0.0
  %294 = vmatpush.msra.mxu0 0.0
  %295 = vmatpush.msra.mxu0 0.0
  %296 = vmatpush.msra.mxu0 0.0
  %297 = vmatpush.msra.mxu0 0.0
  %298 = vmatpush.msra.mxu0 0.0
  %299 = vmatpush.msra.mxu0 0.0
  %300 = vmatpush.msra.mxu0 0.0
  %301 = vmatpush.msra.mxu0 0.0
  %302 = vmatpush.msra.mxu0 0.0
  %303 = vmatpush.msra.mxu0 %v264
  %304 = vmatpush.msra.mxu0 %v255
  %305 = vmatmul.f32.gmra.mxu0 %v32
  %v306 = vpop.f32.mrf.mxu0
  %v307 = vadd.f32 0.0, %v306
  %308 = vdwg.mxu0
  %309 = vmatpush.msra.mxu0 0.0
  %310 = vmatpush.msra.mxu0 0.0
  %311 = vmatpush.msra.mxu0 0.0
  %312 = vmatpush.msra.mxu0 0.0
  %313 = vmatpush.msra.mxu0 0.0
  %314 = vmatpush.msra.mxu0 0.0
  %315 = vmatpush.msra.mxu0 0.0
  %316 = vmatpush.msra.mxu0 0.0
  %317 = vmatpush.msra.mxu0 0.0
  %318 = vmatpush.msra.mxu0 0.0
  %319 = vmatpush.msra.mxu0 0.0
  %320 = vmatpush.msra.mxu0 0.0
  %321 = vmatpush.msra.mxu0 0.0
  %322 = vmatpush.msra.mxu0 0.0
  %323 = vmatpush.msra.mxu0 %v267
  %324 = vmatpush.msra.mxu0 %v256
  %325 = vmatmul.f32.gmra.mxu0 %v32
  %v326 = vpop.f32.mrf.mxu0
  %v327 = vadd.f32 0.0, %v326
  %328 = vdwg.mxu0
  %v329 = vmax.f32 %v62, %v137
  %v330 = vmax.f32 %v82, %v157
  %v331 = vmax.f32 %v102, %v177
  %v332 = vmax.f32 %v212, %v287
  %v333 = vmax.f32 %v232, %v307
  %v334 = vmax.f32 %v252, %v327
  %v335 = vmax.f32 %v329, %v332
  %v336 = vmax.f32 %v330, %v333
  %v337 = vmax.f32 %v331, %v334
  %v338 = vld [vmem:[%s1] sm:$0x3f]
  %340 = vset.pattern.permute.xlu0 0
  %341 = vperm.xlu0 %340, %v338
  %v342 = vpop.permute.xlu0 %341
  %v344 = vadd.f32 %v335, %v342
  %v345 = vadd.f32 %v336, %v342
  %v346 = vadd.f32 %v337, %v342
  %v347 = vmax.f32 %v344, 0.0
  %v348 = vmax.f32 %v345, 0.0
  %v349 = vmax.f32 %v346, 0.0
  %350 = vst [vmem:[%s6] sm:$0x3f] %v347
  %351 = vst [vmem:[%s6 + $0x8] sm:$0x3f] %v348
  %vm352 = vcmask 668672
  %353 = vst.msk [vmem:[%s6 + $0x10] sm:$0x3f] %vm352, %v349
  // Predicated region
  $region26: #{net_forward.3} parent=0 // pred_check
    _
  $region27: #{net_forward.3} parent=0 // pred_check_branch
    %355 = sbr.rel (0) target = $region29
  $region28: #{net_forward.3} parent=0 // pred_region
    _
  $region29: #{net_forward.3} parent=0 // pred_fallthru
    _
  // Predicated region
  $region30: #{net_forward.3} parent=0 // pred_check
    _
  $region31: #{net_forward.3} parent=0 // pred_check_branch
    %357 = sbr.rel (0) target = $region33
  $region32: #{net_forward.3} parent=0 // pred_region
    _
  $region33: #{net_forward.3} parent=0 // pred_fallthru
    _

// kernel: net_forward.4
$region0: #{net_forward.4}
  #allocation0 [shape = 'u32[]', space=smem, size = 0x4, offset = 0x4, fixed_abs, tag = 'smem constant byte address 0x4 - core index']
  #allocation1 [shape = 'u32[72,128]{1,0:T(1,128)}', space=vmem, size = 0x9000, scoped, tag = 'internal scratch']
  %s0 = inlined_call_operand.vmem [shape: f32[16,54], index: 0, kind: input, shape index: {}]
  %s1 = inlined_call_operand.vmem [shape: f32[16,1], index: 1, kind: input, shape index: {}]
  %s2 = inlined_call_operand.vmem [shape: f32[54,50], index: 2, kind: input, shape index: {}]
  %s3 = inlined_call_operand.vmem [shape: f32[54,50], index: 3, kind: input, shape index: {}]
  %s4 = inlined_call_operand.vmem [shape: f32[54,50], index: 4, kind: input, shape index: {}]
  %s5 = inlined_call_operand.vmem [shape: f32[54,50], index: 5, kind: input, shape index: {}]
  %s6 = inlined_call_operand.vmem [shape: f32[16,50], index: 6, kind: output, shape index: {}]
  %s7 = sld [smem:[#allocation0]]
  $region34: #{net_forward.4} parent=0
    _
  %s9 = ssub.s32 1, %s7
  %s10 = scalar_select 0, %s9, %s7
  // Predicated region
  $region2: #{net_forward.4} parent=0 // pred_check
    _
  $region3: #{net_forward.4} parent=0 // pred_check_branch
    %12 = sbr.rel (0) target = $region5
  $region4: #{net_forward.4} parent=0 // pred_region
    _
  $region5: #{net_forward.4} parent=0 // pred_fallthru
    _
  // Predicated region
  $region6: #{net_forward.4} parent=0 // pred_check
    _
  $region7: #{net_forward.4} parent=0 // pred_check_branch
    %14 = sbr.rel (0) target = $region9
  $region8: #{net_forward.4} parent=0 // pred_region
    _
  $region9: #{net_forward.4} parent=0 // pred_fallthru
    _
  // Predicated region
  $region10: #{net_forward.4} parent=0 // pred_check
    _
  $region11: #{net_forward.4} parent=0 // pred_check_branch
    %16 = sbr.rel (0) target = $region13
  $region12: #{net_forward.4} parent=0 // pred_region
    _
  $region13: #{net_forward.4} parent=0 // pred_fallthru
    _
  // Predicated region
  $region14: #{net_forward.4} parent=0 // pred_check
    _
  $region15: #{net_forward.4} parent=0 // pred_check_branch
    %18 = sbr.rel (0) target = $region17
  $region16: #{net_forward.4} parent=0 // pred_region
    _
  $region17: #{net_forward.4} parent=0 // pred_fallthru
    _
  // Predicated region
  $region18: #{net_forward.4} parent=0 // pred_check
    _
  $region19: #{net_forward.4} parent=0 // pred_check_branch
    %20 = sbr.rel (0) target = $region21
  $region20: #{net_forward.4} parent=0 // pred_region
    _
  $region21: #{net_forward.4} parent=0 // pred_fallthru
    _
  // Predicated region
  $region22: #{net_forward.4} parent=0 // pred_check
    _
  $region23: #{net_forward.4} parent=0 // pred_check_branch
    %22 = sbr.rel (0) target = $region25
  $region24: #{net_forward.4} parent=0 // pred_region
    _
  $region25: #{net_forward.4} parent=0 // pred_fallthru
    _
  %v23 = vld [vmem:[%s0] sm:$0xff]
  %v24 = vld [vmem:[%s0 + $0x8] sm:$0xff]
  %v25 = vld [vmem:[%s2] sm:$0xff]
  %v26 = vld [vmem:[%s2 + $0x8] sm:$0xff]
  %v27 = vld [vmem:[%s2 + $0x10] sm:$0xff]
  %v28 = vld [vmem:[%s2 + $0x18] sm:$0xff]
  %v29 = vld [vmem:[%s2 + $0x20] sm:$0xff]
  %v30 = vld [vmem:[%s2 + $0x28] sm:$0xff]
  %v31 = vld [vmem:[%s2 + $0x30] sm:$0x3f]
  %vm32 = vcmask 441344
  %v34 = vsel %vm32, %v23, 0
  %v37 = vsel %vm32, %v24, 0
  %vm39 = vcmask 1045504
  %v41 = vsel %vm39, %v31, 0
  %43 = vmatpush.msra.mxu0 0.0
  %44 = vmatpush.msra.mxu0 0.0
  %45 = vmatpush.msra.mxu0 0.0
  %46 = vmatpush.msra.mxu0 0.0
  %47 = vmatpush.msra.mxu0 0.0
  %48 = vmatpush.msra.mxu0 0.0
  %49 = vmatpush.msra.mxu0 0.0
  %50 = vmatpush.msra.mxu0 0.0
  %51 = vmatpush.msra.mxu0 0.0
  %52 = vmatpush.msra.mxu0 %v41
  %53 = vmatpush.msra.mxu0 %v30
  %54 = vmatpush.msra.mxu0 %v29
  %55 = vmatpush.msra.mxu0 %v28
  %56 = vmatpush.msra.mxu0 %v27
  %57 = vmatpush.msra.mxu0 %v26
  %58 = vmatpush.msra.mxu0 %v25
  %59 = vmatmul.f32.gmra.mxu0 %v34
  %v60 = vpop.f32.mrf.mxu0
  %v61 = vadd.f32 0.0, %v60
  %62 = vmatmul.f32.gmra.mxu0 %v37
  %v63 = vpop.f32.mrf.mxu0
  %v64 = vadd.f32 0.0, %v63
  %65 = vdwg.mxu0
  %v66 = vld [vmem:[%s3] sm:$0xff]
  %v67 = vld [vmem:[%s3 + $0x8] sm:$0xff]
  %v68 = vld [vmem:[%s3 + $0x10] sm:$0xff]
  %v69 = vld [vmem:[%s3 + $0x18] sm:$0xff]
  %v70 = vld [vmem:[%s3 + $0x20] sm:$0xff]
  %v71 = vld [vmem:[%s3 + $0x28] sm:$0xff]
  %v72 = vld [vmem:[%s3 + $0x30] sm:$0x3f]
  %v74 = vsel %vm39, %v72, 0
  %76 = vmatpush.msra.mxu0 0.0
  %77 = vmatpush.msra.mxu0 0.0
  %78 = vmatpush.msra.mxu0 0.0
  %79 = vmatpush.msra.mxu0 0.0
  %80 = vmatpush.msra.mxu0 0.0
  %81 = vmatpush.msra.mxu0 0.0
  %82 = vmatpush.msra.mxu0 0.0
  %83 = vmatpush.msra.mxu0 0.0
  %84 = vmatpush.msra.mxu0 0.0
  %85 = vmatpush.msra.mxu0 %v74
  %86 = vmatpush.msra.mxu0 %v71
  %87 = vmatpush.msra.mxu0 %v70
  %88 = vmatpush.msra.mxu0 %v69
  %89 = vmatpush.msra.mxu0 %v68
  %90 = vmatpush.msra.mxu0 %v67
  %91 = vmatpush.msra.mxu0 %v66
  %92 = vmatmul.f32.gmra.mxu0 %v34
  %v93 = vpop.f32.mrf.mxu0
  %v94 = vadd.f32 0.0, %v93
  %95 = vmatmul.f32.gmra.mxu0 %v37
  %v96 = vpop.f32.mrf.mxu0
  %v97 = vadd.f32 0.0, %v96
  %98 = vdwg.mxu0
  %v99 = vld [vmem:[%s4] sm:$0xff]
  %v100 = vld [vmem:[%s4 + $0x8] sm:$0xff]
  %v101 = vld [vmem:[%s4 + $0x10] sm:$0xff]
  %v102 = vld [vmem:[%s4 + $0x18] sm:$0xff]
  %v103 = vld [vmem:[%s4 + $0x20] sm:$0xff]
  %v104 = vld [vmem:[%s4 + $0x28] sm:$0xff]
  %v105 = vld [vmem:[%s4 + $0x30] sm:$0x3f]
  %v107 = vsel %vm39, %v105, 0
  %109 = vmatpush.msra.mxu0 0.0
  %110 = vmatpush.msra.mxu0 0.0
  %111 = vmatpush.msra.mxu0 0.0
  %112 = vmatpush.msra.mxu0 0.0
  %113 = vmatpush.msra.mxu0 0.0
  %114 = vmatpush.msra.mxu0 0.0
  %115 = vmatpush.msra.mxu0 0.0
  %116 = vmatpush.msra.mxu0 0.0
  %117 = vmatpush.msra.mxu0 0.0
  %118 = vmatpush.msra.mxu0 %v107
  %119 = vmatpush.msra.mxu0 %v104
  %120 = vmatpush.msra.mxu0 %v103
  %121 = vmatpush.msra.mxu0 %v102
  %122 = vmatpush.msra.mxu0 %v101
  %123 = vmatpush.msra.mxu0 %v100
  %124 = vmatpush.msra.mxu0 %v99
  %125 = vmatmul.f32.gmra.mxu0 %v34
  %v126 = vpop.f32.mrf.mxu0
  %v127 = vadd.f32 0.0, %v126
  %128 = vmatmul.f32.gmra.mxu0 %v37
  %v129 = vpop.f32.mrf.mxu0
  %v130 = vadd.f32 0.0, %v129
  %131 = vdwg.mxu0
  %v132 = vld [vmem:[%s5] sm:$0xff]
  %v133 = vld [vmem:[%s5 + $0x8] sm:$0xff]
  %v134 = vld [vmem:[%s5 + $0x10] sm:$0xff]
  %v135 = vld [vmem:[%s5 + $0x18] sm:$0xff]
  %v136 = vld [vmem:[%s5 + $0x20] sm:$0xff]
  %v137 = vld [vmem:[%s5 + $0x28] sm:$0xff]
  %v138 = vld [vmem:[%s5 + $0x30] sm:$0x3f]
  %v140 = vsel %vm39, %v138, 0
  %142 = vmatpush.msra.mxu0 0.0
  %143 = vmatpush.msra.mxu0 0.0
  %144 = vmatpush.msra.mxu0 0.0
  %145 = vmatpush.msra.mxu0 0.0
  %146 = vmatpush.msra.mxu0 0.0
  %147 = vmatpush.msra.mxu0 0.0
  %148 = vmatpush.msra.mxu0 0.0
  %149 = vmatpush.msra.mxu0 0.0
  %150 = vmatpush.msra.mxu0 0.0
  %151 = vmatpush.msra.mxu0 %v140
  %152 = vmatpush.msra.mxu0 %v137
  %153 = vmatpush.msra.mxu0 %v136
  %154 = vmatpush.msra.mxu0 %v135
  %155 = vmatpush.msra.mxu0 %v134
  %156 = vmatpush.msra.mxu0 %v133
  %157 = vmatpush.msra.mxu0 %v132
  %158 = vmatmul.f32.gmra.mxu0 %v34
  %v159 = vpop.f32.mrf.mxu0
  %v160 = vadd.f32 0.0, %v159
  %161 = vmatmul.f32.gmra.mxu0 %v37
  %v162 = vpop.f32.mrf.mxu0
  %v163 = vadd.f32 0.0, %v162
  %164 = vdwg.mxu0
  %v165 = vmax.f32 %v61, %v94
  %v166 = vmax.f32 %v64, %v97
  %v167 = vmax.f32 %v127, %v160
  %v168 = vmax.f32 %v130, %v163
  %v169 = vmax.f32 %v165, %v167
  %v170 = vmax.f32 %v166, %v168
  %v171 = vld [vmem:[%s1] sm:$0xff]
  %v172 = vld [vmem:[%s1 + $0x8] sm:$0xff]
  %174 = vset.pattern.permute.xlu0 0
  %175 = vperm.xlu0 %174, %v171
  %v176 = vpop.permute.xlu0 %175
  %179 = vset.pattern.permute.xlu0 0
  %180 = vperm.xlu0 %179, %v172
  %v181 = vpop.permute.xlu0 %180
  %v183 = vadd.f32 %v169, %v176
  %v184 = vadd.f32 %v170, %v181
  %v185 = vmax.f32 %v183, 0.0
  %v186 = vmax.f32 %v184, 0.0
  %vm187 = vcmask 408576
  %188 = vst.msk [vmem:[%s6] sm:$0xff] %vm187, %v185
  %189 = vst.msk [vmem:[%s6 + $0x8] sm:$0xff] %vm187, %v186
  // Predicated region
  $region26: #{net_forward.4} parent=0 // pred_check
    _
  $region27: #{net_forward.4} parent=0 // pred_check_branch
    %191 = sbr.rel (0) target = $region29
  $region28: #{net_forward.4} parent=0 // pred_region
    _
  $region29: #{net_forward.4} parent=0 // pred_fallthru
    _
  // Predicated region
  $region30: #{net_forward.4} parent=0 // pred_check
    _
  $region31: #{net_forward.4} parent=0 // pred_check_branch
    %193 = sbr.rel (0) target = $region33
  $region32: #{net_forward.4} parent=0 // pred_region
    _
  $region33: #{net_forward.4} parent=0 // pred_fallthru
    _

// kernel: net_forward.5
$region0: #{net_forward.5}
  #allocation0 [shape = 'u32[]', space=smem, size = 0x4, offset = 0x4, fixed_abs, tag = 'smem constant byte address 0x4 - core index']
  #allocation1 [shape = 'u32[72,128]{1,0:T(1,128)}', space=vmem, size = 0x9000, scoped, tag = 'internal scratch']
  %s0 = inlined_call_operand.vmem [shape: f32[2,400], index: 0, kind: input, shape index: {}]
  %s1 = inlined_call_operand.vmem [shape: f32[400,120], index: 1, kind: input, shape index: {}]
  %s2 = inlined_call_operand.vmem [shape: f32[1,120], index: 2, kind: input, shape index: {}]
  %s3 = inlined_call_operand.vmem [shape: f32[120,84], index: 3, kind: input, shape index: {}]
  %s4 = inlined_call_operand.vmem [shape: f32[1,84], index: 4, kind: input, shape index: {}]
  %s5 = inlined_call_operand.vmem [shape: f32[84,10], index: 5, kind: input, shape index: {}]
  %s6 = inlined_call_operand.vmem [shape: f32[1,10], index: 6, kind: input, shape index: {}]
  %s7 = inlined_call_operand.hbm [shape: f32[2,10], index: 7, kind: output, shape index: {}]
  %s8 = sld [smem:[#allocation0]]
  $region38: #{net_forward.5} parent=0
    _
  %s10 = ssub.s32 1, %s8
  %s11 = scalar_select 0, %s10, %s8
  $region1: #{net_forward.5} parent=0
    #allocation2 [shape = 'u8[1024]{0}', space=vmem, size = 0x400, scoped, tag = 'output window, operand 0, single buffered']
    #allocation3 [shape = 's32[1]{0}', space=sflag, size = 0x4, scoped, tag = 'scoped memory for net_forward.5']
    %12 = vsyncpa [#allocation3], 0
    // Predicated region
    $region2: #{net_forward.5} parent=1 // pred_check
      _
    $region3: #{net_forward.5} parent=1 // pred_check_branch
      %14 = sbr.rel (0) target = $region5
    $region4: #{net_forward.5} parent=1 // pred_region
      _
    $region5: #{net_forward.5} parent=1 // pred_fallthru
      _
    // Predicated region
    $region6: #{net_forward.5} parent=1 // pred_check
      _
    $region7: #{net_forward.5} parent=1 // pred_check_branch
      %16 = sbr.rel (0) target = $region9
    $region8: #{net_forward.5} parent=1 // pred_region
      _
    $region9: #{net_forward.5} parent=1 // pred_fallthru
      _
    // Predicated region
    $region10: #{net_forward.5} parent=1 // pred_check
      _
    $region11: #{net_forward.5} parent=1 // pred_check_branch
      %18 = sbr.rel (0) target = $region13
    $region12: #{net_forward.5} parent=1 // pred_region
      _
    $region13: #{net_forward.5} parent=1 // pred_fallthru
      _
    // Predicated region
    $region14: #{net_forward.5} parent=1 // pred_check
      _
    $region15: #{net_forward.5} parent=1 // pred_check_branch
      %20 = sbr.rel (0) target = $region17
    $region16: #{net_forward.5} parent=1 // pred_region
      _
    $region17: #{net_forward.5} parent=1 // pred_fallthru
      _
    // Predicated region
    $region18: #{net_forward.5} parent=1 // pred_check
      _
    $region19: #{net_forward.5} parent=1 // pred_check_branch
      %22 = sbr.rel (0) target = $region21
    $region20: #{net_forward.5} parent=1 // pred_region
      _
    $region21: #{net_forward.5} parent=1 // pred_fallthru
      _
    // Predicated region
    $region22: #{net_forward.5} parent=1 // pred_check
      _
    $region23: #{net_forward.5} parent=1 // pred_check_branch
      %24 = sbr.rel (0) target = $region25
    $region24: #{net_forward.5} parent=1 // pred_region
      _
    $region25: #{net_forward.5} parent=1 // pred_fallthru
      _
    // Predicated region
    $region26: #{net_forward.5} parent=1 // pred_check
      _
    $region27: #{net_forward.5} parent=1 // pred_check_branch
      %26 = sbr.rel (0) target = $region29
    $region28: #{net_forward.5} parent=1 // pred_region
      _
    $region29: #{net_forward.5} parent=1 // pred_fallthru
      _
    %v27 = vld [vmem:[%s0] sm:$0xff]
    %v28 = vld [vmem:[%s1] sm:$0xff]
    %v29 = vld [vmem:[%s1 + $0x8] sm:$0xff]
    %v30 = vld [vmem:[%s1 + $0x10] sm:$0xff]
    %v31 = vld [vmem:[%s1 + $0x18] sm:$0xff]
    %v32 = vld [vmem:[%s1 + $0x20] sm:$0xff]
    %v33 = vld [vmem:[%s1 + $0x28] sm:$0xff]
    %v34 = vld [vmem:[%s1 + $0x30] sm:$0xff]
    %v35 = vld [vmem:[%s1 + $0x38] sm:$0xff]
    %v36 = vld [vmem:[%s1 + $0x40] sm:$0xff]
    %v37 = vld [vmem:[%s1 + $0x48] sm:$0xff]
    %v38 = vld [vmem:[%s1 + $0x50] sm:$0xff]
    %v39 = vld [vmem:[%s1 + $0x58] sm:$0xff]
    %v40 = vld [vmem:[%s1 + $0x60] sm:$0xff]
    %v41 = vld [vmem:[%s1 + $0x68] sm:$0xff]
    %v42 = vld [vmem:[%s1 + $0x70] sm:$0xff]
    %v43 = vld [vmem:[%s1 + $0x78] sm:$0xff]
    %v44 = vld [vmem:[%s1 + $0x80] sm:$0xff]
    %v45 = vld [vmem:[%s1 + $0x88] sm:$0xff]
    %v46 = vld [vmem:[%s1 + $0x90] sm:$0xff]
    %v47 = vld [vmem:[%s1 + $0x98] sm:$0xff]
    %v48 = vld [vmem:[%s1 + $0xa0] sm:$0xff]
    %v49 = vld [vmem:[%s1 + $0xa8] sm:$0xff]
    %v50 = vld [vmem:[%s1 + $0xb0] sm:$0xff]
    %v51 = vld [vmem:[%s1 + $0xb8] sm:$0xff]
    %v52 = vld [vmem:[%s1 + $0xc0] sm:$0xff]
    %v53 = vld [vmem:[%s1 + $0xc8] sm:$0xff]
    %v54 = vld [vmem:[%s1 + $0xd0] sm:$0xff]
    %v55 = vld [vmem:[%s1 + $0xd8] sm:$0xff]
    %v56 = vld [vmem:[%s1 + $0xe0] sm:$0xff]
    %v57 = vld [vmem:[%s1 + $0xe8] sm:$0xff]
    %v58 = vld [vmem:[%s1 + $0xf0] sm:$0xff]
    %v59 = vld [vmem:[%s1 + $0xf8] sm:$0xff]
    %v60 = vld [vmem:[%s1 + $0x100] sm:$0xff]
    %v61 = vld [vmem:[%s1 + $0x108] sm:$0xff]
    %v62 = vld [vmem:[%s1 + $0x110] sm:$0xff]
    %v63 = vld [vmem:[%s1 + $0x118] sm:$0xff]
    %v64 = vld [vmem:[%s1 + $0x120] sm:$0xff]
    %v65 = vld [vmem:[%s1 + $0x128] sm:$0xff]
    %v66 = vld [vmem:[%s1 + $0x130] sm:$0xff]
    %v67 = vld [vmem:[%s1 + $0x138] sm:$0xff]
    %v68 = vld [vmem:[%s1 + $0x140] sm:$0xff]
    %v69 = vld [vmem:[%s1 + $0x148] sm:$0xff]
    %v70 = vld [vmem:[%s1 + $0x150] sm:$0xff]
    %v71 = vld [vmem:[%s1 + $0x158] sm:$0xff]
    %v72 = vld [vmem:[%s1 + $0x160] sm:$0xff]
    %v73 = vld [vmem:[%s1 + $0x168] sm:$0xff]
    %v74 = vld [vmem:[%s1 + $0x170] sm:$0xff]
    %v75 = vld [vmem:[%s1 + $0x178] sm:$0xff]
    %v76 = vld [vmem:[%s1 + $0x180] sm:$0xff]
    %v77 = vld [vmem:[%s1 + $0x188] sm:$0xff]
    %v78 = vld [vmem:[%s2] sm:$0x1]
    %v80 = vperm.slane %v78, 0
    %83 = vst [vmem:[#allocation1] ss:$4 sm:$0xff] %v27
    %v84 = vld.sshfl [vmem:[#allocation1] sm:$0xff pattern:$0x73625140]
    %v85 = vld.sshfl [vmem:[#allocation1 + $0x8] sm:$0xff pattern:$0x73625140]
    %v86 = vld.sshfl [vmem:[#allocation1 + $0x10] sm:$0xff pattern:$0x73625140]
    %v87 = vld.sshfl [vmem:[#allocation1 + $0x18] sm:$0xff pattern:$0x73625140]
    %vm91 = vcmask 130048
    %v92 = vsel %vm91, %v87, 0
    %94 = vmatpush.msra.mxu0 %v43
    %95 = vmatpush.msra.mxu0 %v42
    %96 = vmatpush.msra.mxu0 %v41
    %97 = vmatpush.msra.mxu0 %v40
    %98 = vmatpush.msra.mxu0 %v39
    %99 = vmatpush.msra.mxu0 %v38
    %100 = vmatpush.msra.mxu0 %v37
    %101 = vmatpush.msra.mxu0 %v36
    %102 = vmatpush.msra.mxu0 %v35
    %103 = vmatpush.msra.mxu0 %v34
    %104 = vmatpush.msra.mxu0 %v33
    %105 = vmatpush.msra.mxu0 %v32
    %106 = vmatpush.msra.mxu0 %v31
    %107 = vmatpush.msra.mxu0 %v30
    %108 = vmatpush.msra.mxu0 %v29
    %109 = vmatpush.msra.mxu0 %v28
    %110 = vmatmul.f32.gmra.mxu0 %v84
    %v111 = vpop.f32.mrf.mxu0
    %v112 = vadd.f32 %v80, %v111
    %113 = vdwg.mxu0
    %114 = vmatpush.msra.mxu0 %v59
    %115 = vmatpush.msra.mxu0 %v58
    %116 = vmatpush.msra.mxu0 %v57
    %117 = vmatpush.msra.mxu0 %v56
    %118 = vmatpush.msra.mxu0 %v55
    %119 = vmatpush.msra.mxu0 %v54
    %120 = vmatpush.msra.mxu0 %v53
    %121 = vmatpush.msra.mxu0 %v52
    %122 = vmatpush.msra.mxu0 %v51
    %123 = vmatpush.msra.mxu0 %v50
    %124 = vmatpush.msra.mxu0 %v49
    %125 = vmatpush.msra.mxu0 %v48
    %126 = vmatpush.msra.mxu0 %v47
    %127 = vmatpush.msra.mxu0 %v46
    %128 = vmatpush.msra.mxu0 %v45
    %129 = vmatpush.msra.mxu0 %v44
    %130 = vmatmul.f32.gmra.mxu0 %v85
    %v131 = vpop.f32.mrf.mxu0
    %v132 = vadd.f32 %v112, %v131
    %133 = vdwg.mxu0
    %134 = vmatpush.msra.mxu0 %v75
    %135 = vmatpush.msra.mxu0 %v74
    %136 = vmatpush.msra.mxu0 %v73
    %137 = vmatpush.msra.mxu0 %v72
    %138 = vmatpush.msra.mxu0 %v71
    %139 = vmatpush.msra.mxu0 %v70
    %140 = vmatpush.msra.mxu0 %v69
    %141 = vmatpush.msra.mxu0 %v68
    %142 = vmatpush.msra.mxu0 %v67
    %143 = vmatpush.msra.mxu0 %v66
    %144 = vmatpush.msra.mxu0 %v65
    %145 = vmatpush.msra.mxu0 %v64
    %146 = vmatpush.msra.mxu0 %v63
    %147 = vmatpush.msra.mxu0 %v62
    %148 = vmatpush.msra.mxu0 %v61
    %149 = vmatpush.msra.mxu0 %v60
    %150 = vmatmul.f32.gmra.mxu0 %v86
    %v151 = vpop.f32.mrf.mxu0
    %v152 = vadd.f32 %v132, %v151
    %153 = vdwg.mxu0
    %154 = vmatpush.msra.mxu0 0.0
    %155 = vmatpush.msra.mxu0 0.0
    %156 = vmatpush.msra.mxu0 0.0
    %157 = vmatpush.msra.mxu0 0.0
    %158 = vmatpush.msra.mxu0 0.0
    %159 = vmatpush.msra.mxu0 0.0
    %160 = vmatpush.msra.mxu0 0.0
    %161 = vmatpush.msra.mxu0 0.0
    %162 = vmatpush.msra.mxu0 0.0
    %163 = vmatpush.msra.mxu0 0.0
    %164 = vmatpush.msra.mxu0 0.0
    %165 = vmatpush.msra.mxu0 0.0
    %166 = vmatpush.msra.mxu0 0.0
    %167 = vmatpush.msra.mxu0 0.0
    %168 = vmatpush.msra.mxu0 %v77
    %169 = vmatpush.msra.mxu0 %v76
    %170 = vmatmul.f32.gmra.mxu0 %v92
    %v171 = vpop.f32.mrf.mxu0
    %v172 = vadd.f32 %v152, %v171
    %173 = vdwg.mxu0
    %v174 = vmax.f32 %v172, 0.0
    %v175 = vld [vmem:[%s3] sm:$0xff]
    %v176 = vld [vmem:[%s3 + $0x8] sm:$0xff]
    %v177 = vld [vmem:[%s3 + $0x10] sm:$0xff]
    %v178 = vld [vmem:[%s3 + $0x18] sm:$0xff]
    %v179 = vld [vmem:[%s3 + $0x20] sm:$0xff]
    %v180 = vld [vmem:[%s3 + $0x28] sm:$0xff]
    %v181 = vld [vmem:[%s3 + $0x30] sm:$0xff]
    %v182 = vld [vmem:[%s3 + $0x38] sm:$0xff]
    %v183 = vld [vmem:[%s3 + $0x40] sm:$0xff]
    %v184 = vld [vmem:[%s3 + $0x48] sm:$0xff]
    %v185 = vld [vmem:[%s3 + $0x50] sm:$0xff]
    %v186 = vld [vmem:[%s3 + $0x58] sm:$0xff]
    %v187 = vld [vmem:[%s3 + $0x60] sm:$0xff]
    %v188 = vld [vmem:[%s3 + $0x68] sm:$0xff]
    %v189 = vld [vmem:[%s3 + $0x70] sm:$0xff]
    %v190 = vld [vmem:[%s4] sm:$0x1]
    %v192 = vperm.slane %v190, 0
    %vm194 = vcmask 982016
    %v196 = vsel %vm194, %v174, 0
    %198 = vmatpush.msra.mxu0 0.0
    %199 = vmatpush.msra.mxu0 %v189
    %200 = vmatpush.msra.mxu0 %v188
    %201 = vmatpush.msra.mxu0 %v187
    %202 = vmatpush.msra.mxu0 %v186
    %203 = vmatpush.msra.mxu0 %v185
    %204 = vmatpush.msra.mxu0 %v184
    %205 = vmatpush.msra.mxu0 %v183
    %206 = vmatpush.msra.mxu0 %v182
    %207 = vmatpush.msra.mxu0 %v181
    %208 = vmatpush.msra.mxu0 %v180
    %209 = vmatpush.msra.mxu0 %v179
    %210 = vmatpush.msra.mxu0 %v178
    %211 = vmatpush.msra.mxu0 %v177
    %212 = vmatpush.msra.mxu0 %v176
    %213 = vmatpush.msra.mxu0 %v175
    %214 = vmatmul.f32.gmra.mxu0 %v196
    %v215 = vpop.f32.mrf.mxu0
    %v216 = vadd.f32 %v192, %v215
    %217 = vdwg.mxu0
    %v218 = vmax.f32 %v216, 0.0
    %v219 = vld [vmem:[%s5] sm:$0xff]
    %v220 = vld [vmem:[%s5 + $0x8] sm:$0xff]
    %v221 = vld [vmem:[%s5 + $0x10] sm:$0xff]
    %v222 = vld [vmem:[%s5 + $0x18] sm:$0xff]
    %v223 = vld [vmem:[%s5 + $0x20] sm:$0xff]
    %v224 = vld [vmem:[%s5 + $0x28] sm:$0xff]
    %v225 = vld [vmem:[%s5 + $0x30] sm:$0xff]
    %v226 = vld [vmem:[%s5 + $0x38] sm:$0xff]
    %v227 = vld [vmem:[%s5 + $0x40] sm:$0xff]
    %v228 = vld [vmem:[%s5 + $0x48] sm:$0xff]
    %v229 = vld [vmem:[%s5 + $0x50] sm:$0xf]
    %v230 = vld [vmem:[%s6] sm:$0x1]
    %v232 = vperm.slane %v230, 0
    %vm234 = vcmask 687104
    %v236 = vsel %vm234, %v218, 0
    %vm238 = vcmask 1043456
    %v240 = vsel %vm238, %v229, 0
    %242 = vmatpush.msra.mxu0 0.0
    %243 = vmatpush.msra.mxu0 0.0
    %244 = vmatpush.msra.mxu0 0.0
    %245 = vmatpush.msra.mxu0 0.0
    %246 = vmatpush.msra.mxu0 0.0
    %247 = vmatpush.msra.mxu0 %v240
    %248 = vmatpush.msra.mxu0 %v228
    %249 = vmatpush.msra.mxu0 %v227
    %250 = vmatpush.msra.mxu0 %v226
    %251 = vmatpush.msra.mxu0 %v225
    %252 = vmatpush.msra.mxu0 %v224
    %253 = vmatpush.msra.mxu0 %v223
    %254 = vmatpush.msra.mxu0 %v222
    %255 = vmatpush.msra.mxu0 %v221
    %256 = vmatpush.msra.mxu0 %v220
    %257 = vmatpush.msra.mxu0 %v219
    %258 = vmatmul.f32.gmra.mxu0 %v236
    %v259 = vpop.f32.mrf.mxu0
    %v260 = vadd.f32 %v232, %v259
    %261 = vdwg.mxu0
    %vm262 = vcmask 74752
    %v263 = vsel %vm262, %v260, -inf
    %264 = vmax.xlane.f32.xlu0 %v263
    %v265 = vpop.xlane.xlu0 %264
    %v266 = vsub.f32 %v260, %v265
    %v267 = vmul.f32 %v266, 1.442695
    %v268 = vpow.pop %v267
    %v269 = vsel %vm262, %v268, 0.0
    %270 = vadd.xlane.f32.xlu0 %v269
    %v271 = vpop.xlane.xlu0 %270
    %v272 = vlog2.pop %v271
    %v273 = vmul.f32 %v272, 0.6931472
    %v274 = vsub.f32 %v266, %v273
    %275 = vst.msk [vmem:[#allocation2] sm:$0x3] %vm262, %v274
    // Predicated region
    $region30: #{net_forward.5} parent=1 // pred_check
      _
    $region31: #{net_forward.5} parent=1 // pred_check_branch
      %277 = sbr.rel (0) target = $region33
    $region32: #{net_forward.5} parent=1 // pred_region
      %279 = vsyncadd [#allocation3], 0
      %s281 = sshll.u32 [#allocation2], 4
      %s282 = int_to_ptr.vmem [resolvable:$true] %s281
      %s283 = sshll.u32 %s7, 4
      %s284 = int_to_ptr.hbm [resolvable:$true] %s283
      %286 = dma.vmem_to_hbm [thread:$0]  %s282, 32, %s284, [#allocation3]
    $region33: #{net_forward.5} parent=1 // pred_fallthru
      _
    // Predicated region
    $region34: #{net_forward.5} parent=1 // pred_check
      _
    $region35: #{net_forward.5} parent=1 // pred_check_branch
      %288 = sbr.rel (0) target = $region37
    $region36: #{net_forward.5} parent=1 // pred_region
      %290 = dma.done [#allocation3], 32
    $region37: #{net_forward.5} parent=1 // pred_fallthru
      _
    %291 = vsyncpa [#allocation3], 1

</llo_original>
